<compile_context>
chip_gen: v6e
topology: v6e:2x2x1
jax: 0.10.0
libtpu: 0.0.40
codegen_flags: <defaults>
</compile_context>

<pallas_src>
import math

import jax
import jax.numpy as jnp
from jax.experimental import pallas as pl
from jax.experimental.pallas import tpu as pltpu

# Module hyper-parameters (from the PyTorch spec).
D_MODEL = 32
NHEAD = 4
HEAD_DIM = D_MODEL // NHEAD
DIM_FF = 64
NLAYERS = 2
SEQ = 2                      # stack([root, left])
EPS = 1e-5
SCALE = 1.0 / math.sqrt(HEAD_DIM)

# ---- packed-buffer layout ---------------------------------------------------
# Weight slab: (NLAYERS * W_ROWS, W_COLS), W_ROWS = W_COLS = 128.
# Per-layer 128x128 sub-slab (x @ W layout, i.e. PyTorch W^T):
#   rows 0:32,   cols  0:96   W_qkv  (q | k | v concatenated on columns)
#   rows 0:32,   cols 96:128  W_out
#   rows 32:64,  cols  0:64   W_ff1
#   rows 64:128, cols  0:32   W_ff2
W_ROWS = 4 * D_MODEL          # 128
W_COLS = 4 * D_MODEL          # 128

# Vector slab: (VEC_ROWS, 96) of row vectors.
VEC_POS = 0                   # rows 0:2  -> positional embedding (2, 32)
VEC_LAYER_BASE = 2
VEC_LAYER_STRIDE = 8          # qkv_b, out_b, ff1_b, ff2_b, n1_w, n1_b, n2_w, n2_b
VEC_GLOBAL = VEC_LAYER_BASE + NLAYERS * VEC_LAYER_STRIDE   # enc_w, enc_b, fin_w, fin_b
VEC_ROWS = VEC_GLOBAL + 4     # 22
VEC_COLS = 3 * D_MODEL        # 96


def _layer_norm(x, gamma, beta):
    mean = jnp.mean(x, axis=-1, keepdims=True)
    var = jnp.mean(jnp.square(x - mean), axis=-1, keepdims=True)
    return (x - mean) * jax.lax.rsqrt(var + EPS) * gamma + beta


def _transformer_kernel(root_ref, left_ref, w_ref, vec_ref, o_ref, x_sc):
    f32 = jnp.float32
    D, F = D_MODEL, DIM_FF

    # Constant head-pooling matrices (built once, pure VPU ops):
    #   P[d, h]  = 1 if lane d belongs to head h   (D_MODEL, NHEAD)
    #   PT[h, d] = P[d, h]                          (NHEAD, D_MODEL)
    d_i = jax.lax.broadcasted_iota(jnp.int32, (D, NHEAD), 0)
    h_i = jax.lax.broadcasted_iota(jnp.int32, (D, NHEAD), 1)
    dd = d_i - h_i * HEAD_DIM
    P = jnp.where((dd >= 0) & (dd < HEAD_DIM), 1.0, 0.0)
    h_t = jax.lax.broadcasted_iota(jnp.int32, (NHEAD, D), 0)
    d_t = jax.lax.broadcasted_iota(jnp.int32, (NHEAD, D), 1)
    ddt = d_t - h_t * HEAD_DIM
    PT = jnp.where((ddt >= 0) & (ddt < HEAD_DIM), 1.0, 0.0)

    # x = stack([root, left]) + pos, assembled in-kernel (two row stores).
    x_sc[0:1, :] = root_ref[...]
    x_sc[1:2, :] = left_ref[...]
    x = x_sc[...] + vec_ref[VEC_POS:VEC_POS + SEQ, 0:D]            # (2, 32)

    for l in range(NLAYERS):                                        # static unroll
        wr = l * W_ROWS
        vb = VEC_LAYER_BASE + l * VEC_LAYER_STRIDE

        # ---- pre-norm multi-head self-attention ----
        h = _layer_norm(x, vec_ref[vb + 4:vb + 5, 0:D],
                        vec_ref[vb + 5:vb + 6, 0:D])
        qkv = (jnp.dot(h, w_ref[wr:wr + D, 0:3 * D],
                       preferred_element_type=f32)
               + vec_ref[vb:vb + 1, 0:3 * D])                       # (2, 96)
        q = qkv[:, 0:D] * SCALE
        k = qkv[:, D:2 * D]
        v = qkv[:, 2 * D:3 * D]

        # All-head scores vs key row 0 / key row 1 via head pooling.
        s0 = jnp.dot(q * k[0:1, :], P, preferred_element_type=f32)  # (2, NHEAD)
        s1 = jnp.dot(q * k[1:2, :], P, preferred_element_type=f32)  # (2, NHEAD)
        m = jnp.maximum(s0, s1)
        e0 = jnp.exp(s0 - m)
        e1 = jnp.exp(s1 - m)
        z = e0 + e1
        p0 = e0 / z
        p1 = e1 / z
        # Lane-broadcast probabilities onto each head's 8 lanes, combine with v.
        attn_h = (jnp.dot(p0, PT, preferred_element_type=f32) * v[0:1, :]
                  + jnp.dot(p1, PT, preferred_element_type=f32) * v[1:2, :])  # (2, 32)
        attn = (jnp.dot(attn_h, w_ref[wr:wr + D, 3 * D:4 * D],
                        preferred_element_type=f32)
                + vec_ref[vb + 1:vb + 2, 0:D])
        x = x + attn                                                # dropout = identity (eval)

        # ---- pre-norm feed-forward (ReLU) ----
        h = _layer_norm(x, vec_ref[vb + 6:vb + 7, 0:D],
                        vec_ref[vb + 7:vb + 8, 0:D])
        ff = (jnp.dot(h, w_ref[wr + D:wr + 2 * D, 0:F],
                      preferred_element_type=f32)
              + vec_ref[vb + 2:vb + 3, 0:F])
        ff = jnp.maximum(ff, 0.0)
        ff = (jnp.dot(ff, w_ref[wr + 2 * D:wr + 2 * D + F, 0:D],
                      preferred_element_type=f32)
              + vec_ref[vb + 3:vb + 4, 0:D])
        x = x + ff

    x = _layer_norm(x, vec_ref[VEC_GLOBAL + 0:VEC_GLOBAL + 1, 0:D],
                    vec_ref[VEC_GLOBAL + 1:VEC_GLOBAL + 2, 0:D])    # encoder norm
    x = _layer_norm(x, vec_ref[VEC_GLOBAL + 2:VEC_GLOBAL + 3, 0:D],
                    vec_ref[VEC_GLOBAL + 3:VEC_GLOBAL + 4, 0:D])    # final_norm
    o_ref[...] = x[0:1, :]                                          # root position only


@jax.jit
def transformer_unary_agg_forward(root, left, packed):
    """Pallas implementation of transformer_unary_agg.forward (eval mode)."""
    root2 = root.reshape(1, D_MODEL).astype(jnp.float32)
    left2 = left.reshape(1, D_MODEL).astype(jnp.float32)
    out = pl.pallas_call(
        _transformer_kernel,
        out_shape=jax.ShapeDtypeStruct((1, D_MODEL), jnp.float32),
        in_specs=[pl.BlockSpec(memory_space=pltpu.MemorySpace.VMEM)] * 4,
        out_specs=pl.BlockSpec(memory_space=pltpu.MemorySpace.VMEM),
        scratch_shapes=[pltpu.VMEM((SEQ, D_MODEL), jnp.float32)],
    )(root2, left2, packed["w"], packed["vec"])
    return out[0]                                                   # (D_MODEL,)


def pack_params(p):
    """One-time packing of the 22 raw parameter arrays into 2 HBM slabs."""
    D, F = D_MODEL, DIM_FF
    w = jnp.zeros((NLAYERS * W_ROWS, W_COLS), jnp.float32)
    vec = jnp.zeros((VEC_ROWS, VEC_COLS), jnp.float32)
    vec = vec.at[VEC_POS:VEC_POS + SEQ, 0:D].set(p["pos"])
    for l in range(NLAYERS):
        r = l * W_ROWS
        w = w.at[r:r + D, 0:3 * D].set(
            jnp.concatenate([p["q_w"][l], p["k_w"][l], p["v_w"][l]], axis=1))
        w = w.at[r:r + D, 3 * D:4 * D].set(p["out_w"][l])
        w = w.at[r + D:r + 2 * D, 0:F].set(p["ff1_w"][l])
        w = w.at[r + 2 * D:r + 2 * D + F, 0:D].set(p["ff2_w"][l])
        b = VEC_LAYER_BASE + l * VEC_LAYER_STRIDE
        vec = vec.at[b + 0, 0:3 * D].set(
            jnp.concatenate([p["q_b"][l][0], p["k_b"][l][0], p["v_b"][l][0]], axis=0))
        vec = vec.at[b + 1, 0:D].set(p["out_b"][l][0])
        vec = vec.at[b + 2, 0:F].set(p["ff1_b"][l][0])
        vec = vec.at[b + 3, 0:D].set(p["ff2_b"][l][0])
        vec = vec.at[b + 4, 0:D].set(p["n1_w"][l][0])
        vec = vec.at[b + 5, 0:D].set(p["n1_b"][l][0])
        vec = vec.at[b + 6, 0:D].set(p["n2_w"][l][0])
        vec = vec.at[b + 7, 0:D].set(p["n2_b"][l][0])
    g = VEC_GLOBAL
    vec = vec.at[g + 0, 0:D].set(p["enc_w"][0])
    vec = vec.at[g + 1, 0:D].set(p["enc_b"][0])
    vec = vec.at[g + 2, 0:D].set(p["fin_w"][0])
    vec = vec.at[g + 3, 0:D].set(p["fin_b"][0])
    return {"w": w, "vec": vec}


def reference_forward(root, left, params):
    """Pure-JAX reference with identical math (for correctness check)."""
    x = jnp.stack([root, left], axis=0) + params["pos"]
    for l in range(NLAYERS):
        h = _layer_norm(x, params["n1_w"][l], params["n1_b"][l])
        q = h @ params["q_w"][l] + params["q_b"][l]
        k = h @ params["k_w"][l] + params["k_b"][l]
        v = h @ params["v_w"][l] + params["v_b"][l]
        qh = q.reshape(SEQ, NHEAD, HEAD_DIM).transpose(1, 0, 2)
        kh = k.reshape(SEQ, NHEAD, HEAD_DIM).transpose(1, 0, 2)
        vh = v.reshape(SEQ, NHEAD, HEAD_DIM).transpose(1, 0, 2)
        s = jnp.einsum("hsd,htd->hst", qh, kh) * SCALE
        p = jax.nn.softmax(s, axis=-1)
        o = jnp.einsum("hst,htd->hsd", p, vh).transpose(1, 0, 2).reshape(SEQ, D_MODEL)
        x = x + o @ params["out_w"][l] + params["out_b"][l]
        h = _layer_norm(x, params["n2_w"][l], params["n2_b"][l])
        ff = jnp.maximum(h @ params["ff1_w"][l] + params["ff1_b"][l], 0.0)
        x = x + ff @ params["ff2_w"][l] + params["ff2_b"][l]
    x = _layer_norm(x, params["enc_w"], params["enc_b"])
    x = _layer_norm(x, params["fin_w"], params["fin_b"])
    return x[0]


def init_params(key):
    ks = jax.random.split(key, 21)
    n = lambda k, shape, s=0.1: (s * jax.random.normal(k, shape)).astype(jnp.float32)
    return {
        "pos":   jax.random.normal(ks[0], (SEQ, D_MODEL), jnp.float32),
        # weight matrices are stored in x @ W layout (i.e. PyTorch W^T)
        "q_w":   n(ks[1],  (NLAYERS, D_MODEL, D_MODEL)),
        "q_b":   n(ks[2],  (NLAYERS, 1, D_MODEL), 0.02),
        "k_w":   n(ks[3],  (NLAYERS, D_MODEL, D_MODEL)),
        "k_b":   n(ks[4],  (NLAYERS, 1, D_MODEL), 0.02),
        "v_w":   n(ks[5],  (NLAYERS, D_MODEL, D_MODEL)),
        "v_b":   n(ks[6],  (NLAYERS, 1, D_MODEL), 0.02),
        "out_w": n(ks[7],  (NLAYERS, D_MODEL, D_MODEL)),
        "out_b": n(ks[8],  (NLAYERS, 1, D_MODEL), 0.02),
        "ff1_w": n(ks[9],  (NLAYERS, D_MODEL, DIM_FF)),
        "ff1_b": n(ks[10], (NLAYERS, 1, DIM_FF), 0.02),
        "ff2_w": n(ks[11], (NLAYERS, DIM_FF, D_MODEL)),
        "ff2_b": n(ks[12], (NLAYERS, 1, D_MODEL), 0.02),
        "n1_w":  1.0 + n(ks[13], (NLAYERS, 1, D_MODEL), 0.05),
        "n1_b":  n(ks[14], (NLAYERS, 1, D_MODEL), 0.05),
        "n2_w":  1.0 + n(ks[15], (NLAYERS, 1, D_MODEL), 0.05),
        "n2_b":  n(ks[16], (NLAYERS, 1, D_MODEL), 0.05),
        "enc_w": 1.0 + n(ks[17], (1, D_MODEL), 0.05),
        "enc_b": n(ks[18], (1, D_MODEL), 0.05),
        "fin_w": 1.0 + n(ks[19], (1, D_MODEL), 0.05),
        "fin_b": n(ks[20], (1, D_MODEL), 0.05),
    }


if __name__ == "__main__":
    key = jax.random.PRNGKey(0)
    k_params, k_root, k_left = jax.random.split(key, 3)
    params = init_params(k_params)
    packed = pack_params(params)          # one-time packing, not on the per-call path
    root = jax.random.normal(k_root, (D_MODEL,), dtype=jnp.float32)
    left = jax.random.normal(k_left, (D_MODEL,), dtype=jnp.float32)

    out = transformer_unary_agg_forward(root, left, packed)
    out = jax.block_until_ready(out)
    ref = reference_forward(root, left, params)

    assert out.shape == (D_MODEL,) and out.dtype == jnp.float32
    # Kernel (Mosaic) and reference (XLA) may route f32 matmuls through
    # different MXU precision passes; tolerance covers that while still
    # catching any real implementation bug (errors there would be O(1)).
    max_err = float(jnp.max(jnp.abs(out - ref)))
    assert bool(jnp.allclose(out, ref, rtol=1e-2, atol=1e-2)), f"max abs err {max_err}"
    print("KERNEL_OK")
</pallas_src>

<mosaic_0001>
module attributes {stable_mosaic.version = 11 : i64} {
  func.func @_transformer_kernel(%arg0: memref<1x32xf32, #tpu.memory_space<vmem>>, %arg1: memref<1x32xf32, #tpu.memory_space<vmem>>, %arg2: memref<256x128xf32, #tpu.memory_space<vmem>>, %arg3: memref<22x96xf32, #tpu.memory_space<vmem>>, %arg4: memref<1x32xf32, #tpu.memory_space<vmem>>, %arg5: memref<2x32xf32, #tpu.memory_space<vmem>>) attributes {dimension_semantics = [], scalar_prefetch = 0 : i64, scratch_operands = 1 : i64, tpu.core_type = #tpu.core_type<tc>} {
    %0 = tpu.iota {dimensions = array<i32: 0>} : vector<32x4xi32>
    %1 = tpu.iota {dimensions = array<i32: 1>} : vector<32x4xi32>
    %c8_i32 = arith.constant 8 : i32
    %2 = vector.broadcast %c8_i32 : i32 to vector<32x4xi32>
    %3 = arith.muli %1, %2 : vector<32x4xi32>
    %4 = arith.subi %0, %3 : vector<32x4xi32>
    %c0_i32 = arith.constant 0 : i32
    %5 = vector.broadcast %c0_i32 : i32 to vector<32x4xi32>
    %6 = arith.cmpi sge, %4, %5 : vector<32x4xi32>
    %c8_i32_0 = arith.constant 8 : i32
    %7 = vector.broadcast %c8_i32_0 : i32 to vector<32x4xi32>
    %8 = arith.cmpi slt, %4, %7 : vector<32x4xi32>
    %9 = arith.andi %6, %8 : vector<32x4xi1>
    %cst = arith.constant 1.000000e+00 : f32
    %cst_1 = arith.constant 0.000000e+00 : f32
    %10 = vector.broadcast %cst : f32 to vector<32x4xf32>
    %11 = vector.broadcast %cst_1 : f32 to vector<32x4xf32>
    %12 = arith.select %9, %10, %11 : vector<32x4xi1>, vector<32x4xf32>
    %13 = tpu.iota {dimensions = array<i32: 0>} : vector<4x32xi32>
    %14 = tpu.iota {dimensions = array<i32: 1>} : vector<4x32xi32>
    %c8_i32_2 = arith.constant 8 : i32
    %15 = vector.broadcast %c8_i32_2 : i32 to vector<4x32xi32>
    %16 = arith.muli %13, %15 : vector<4x32xi32>
    %17 = arith.subi %14, %16 : vector<4x32xi32>
    %c0_i32_3 = arith.constant 0 : i32
    %18 = vector.broadcast %c0_i32_3 : i32 to vector<4x32xi32>
    %19 = arith.cmpi sge, %17, %18 : vector<4x32xi32>
    %c8_i32_4 = arith.constant 8 : i32
    %20 = vector.broadcast %c8_i32_4 : i32 to vector<4x32xi32>
    %21 = arith.cmpi slt, %17, %20 : vector<4x32xi32>
    %22 = arith.andi %19, %21 : vector<4x32xi1>
    %cst_5 = arith.constant 1.000000e+00 : f32
    %cst_6 = arith.constant 0.000000e+00 : f32
    %23 = vector.broadcast %cst_5 : f32 to vector<4x32xf32>
    %24 = vector.broadcast %cst_6 : f32 to vector<4x32xf32>
    %25 = arith.select %22, %23, %24 : vector<4x32xi1>, vector<4x32xf32>
    %c0 = arith.constant 0 : index
    %c0_7 = arith.constant 0 : index
    %26 = vector.load %arg0[%c0, %c0_7] : memref<1x32xf32, #tpu.memory_space<vmem>>, vector<1x32xf32>
    %c0_8 = arith.constant 0 : index
    %c0_9 = arith.constant 0 : index
    %27 = vector.load %arg5[%c0_8, %c0_9] : memref<2x32xf32, #tpu.memory_space<vmem>>, vector<1x32xf32>
    tpu.vector_store %arg5[%c0_8, %c0_9], %26 {strides = array<i32>} : memref<2x32xf32, #tpu.memory_space<vmem>>, vector<1x32xf32>,
    %c0_10 = arith.constant 0 : index
    %c0_11 = arith.constant 0 : index
    %28 = vector.load %arg1[%c0_10, %c0_11] : memref<1x32xf32, #tpu.memory_space<vmem>>, vector<1x32xf32>
    %c1 = arith.constant 1 : index
    %c0_12 = arith.constant 0 : index
    %29 = vector.load %arg5[%c1, %c0_12] : memref<2x32xf32, #tpu.memory_space<vmem>>, vector<1x32xf32>
    tpu.vector_store %arg5[%c1, %c0_12], %28 {strides = array<i32>} : memref<2x32xf32, #tpu.memory_space<vmem>>, vector<1x32xf32>,
    %c0_13 = arith.constant 0 : index
    %c0_14 = arith.constant 0 : index
    %30 = vector.load %arg5[%c0_13, %c0_14] : memref<2x32xf32, #tpu.memory_space<vmem>>, vector<2x32xf32>
    %c0_15 = arith.constant 0 : index
    %c0_16 = arith.constant 0 : index
    %31 = vector.load %arg3[%c0_15, %c0_16] : memref<22x96xf32, #tpu.memory_space<vmem>>, vector<2x32xf32>
    %32 = arith.addf %30, %31 : vector<2x32xf32>
    %c6 = arith.constant 6 : index
    %c0_17 = arith.constant 0 : index
    %33 = vector.load %arg3[%c6, %c0_17] : memref<22x96xf32, #tpu.memory_space<vmem>>, vector<1x32xf32>
    %c7 = arith.constant 7 : index
    %c0_18 = arith.constant 0 : index
    %34 = vector.load %arg3[%c7, %c0_18] : memref<22x96xf32, #tpu.memory_space<vmem>>, vector<1x32xf32>
    %cst_19 = arith.constant dense<0.000000e+00> : vector<2xf32>
    %35 = vector.multi_reduction <add>, %32, %cst_19 [1] : vector<2x32xf32> to vector<2xf32>
    %36 = vector.shape_cast %35 : vector<2xf32> to vector<2x1xf32>
    %cst_20 = arith.constant 3.200000e+01 : f32
    %37 = vector.broadcast %cst_20 : f32 to vector<2x1xf32>
    %38 = arith.divf %36, %37 : vector<2x1xf32>
    %39 = vector.broadcast %38 : vector<2x1xf32> to vector<2x32xf32>
    %40 = arith.subf %32, %39 : vector<2x32xf32>
    %41 = arith.mulf %40, %40 : vector<2x32xf32>
    %cst_21 = arith.constant dense<0.000000e+00> : vector<2xf32>
    %42 = vector.multi_reduction <add>, %41, %cst_21 [1] : vector<2x32xf32> to vector<2xf32>
    %43 = vector.shape_cast %42 : vector<2xf32> to vector<2x1xf32>
    %cst_22 = arith.constant 3.200000e+01 : f32
    %44 = vector.broadcast %cst_22 : f32 to vector<2x1xf32>
    %45 = arith.divf %43, %44 : vector<2x1xf32>
    %46 = vector.broadcast %38 : vector<2x1xf32> to vector<2x32xf32>
    %47 = arith.subf %32, %46 : vector<2x32xf32>
    %cst_23 = arith.constant 9.99999974E-6 : f32
    %48 = vector.broadcast %cst_23 : f32 to vector<2x1xf32>
    %49 = arith.addf %45, %48 : vector<2x1xf32>
    %50 = math.rsqrt %49 : vector<2x1xf32>
    %51 = vector.broadcast %50 : vector<2x1xf32> to vector<2x32xf32>
    %52 = arith.mulf %47, %51 : vector<2x32xf32>
    %53 = vector.broadcast %33 : vector<1x32xf32> to vector<2x32xf32>
    %54 = arith.mulf %52, %53 : vector<2x32xf32>
    %55 = vector.broadcast %34 : vector<1x32xf32> to vector<2x32xf32>
    %56 = arith.addf %54, %55 : vector<2x32xf32>
    %c0_24 = arith.constant 0 : index
    %c0_25 = arith.constant 0 : index
    %57 = vector.load %arg2[%c0_24, %c0_25] : memref<256x128xf32, #tpu.memory_space<vmem>>, vector<32x96xf32>
    %cst_26 = arith.constant dense<0.000000e+00> : vector<2x96xf32>
    %58 = tpu.matmul %56, %57, %cst_26 {dimension_numbers = #tpu.dot_dimension_numbers<[1], [0], [0], [1], [0, 0, 1, 1], [], []>} : vector<2x32xf32>, vector<32x96xf32>, vector<2x96xf32> -> vector<2x96xf32>
    %c2 = arith.constant 2 : index
    %c0_27 = arith.constant 0 : index
    %59 = vector.load %arg3[%c2, %c0_27] : memref<22x96xf32, #tpu.memory_space<vmem>>, vector<1x96xf32>
    %60 = vector.broadcast %59 : vector<1x96xf32> to vector<2x96xf32>
    %61 = arith.addf %58, %60 : vector<2x96xf32>
    %62 = vector.extract_strided_slice %61 {offsets = [0, 0], sizes = [2, 32], strides = [1, 1]} : vector<2x96xf32> to vector<2x32xf32>
    %cst_28 = arith.constant 0.353553385 : f32
    %63 = vector.broadcast %cst_28 : f32 to vector<2x32xf32>
    %64 = arith.mulf %62, %63 : vector<2x32xf32>
    %65 = vector.extract_strided_slice %61 {offsets = [0, 32], sizes = [2, 32], strides = [1, 1]} : vector<2x96xf32> to vector<2x32xf32>
    %66 = vector.extract_strided_slice %61 {offsets = [0, 64], sizes = [2, 32], strides = [1, 1]} : vector<2x96xf32> to vector<2x32xf32>
    %67 = vector.extract_strided_slice %65 {offsets = [0, 0], sizes = [1, 32], strides = [1, 1]} : vector<2x32xf32> to vector<1x32xf32>
    %68 = vector.broadcast %67 : vector<1x32xf32> to vector<2x32xf32>
    %69 = arith.mulf %64, %68 : vector<2x32xf32>
    %cst_29 = arith.constant dense<0.000000e+00> : vector<2x4xf32>
    %70 = tpu.matmul %69, %12, %cst_29 {dimension_numbers = #tpu.dot_dimension_numbers<[1], [0], [0], [1], [0, 0, 1, 1], [], []>} : vector<2x32xf32>, vector<32x4xf32>, vector<2x4xf32> -> vector<2x4xf32>
    %71 = vector.extract_strided_slice %65 {offsets = [1, 0], sizes = [1, 32], strides = [1, 1]} : vector<2x32xf32> to vector<1x32xf32>
    %72 = vector.broadcast %71 : vector<1x32xf32> to vector<2x32xf32>
    %73 = arith.mulf %64, %72 : vector<2x32xf32>
    %cst_30 = arith.constant dense<0.000000e+00> : vector<2x4xf32>
    %74 = tpu.matmul %73, %12, %cst_30 {dimension_numbers = #tpu.dot_dimension_numbers<[1], [0], [0], [1], [0, 0, 1, 1], [], []>} : vector<2x32xf32>, vector<32x4xf32>, vector<2x4xf32> -> vector<2x4xf32>
    %75 = arith.maximumf %70, %74 : vector<2x4xf32>
    %76 = arith.subf %70, %75 : vector<2x4xf32>
    %77 = math.exp %76 : vector<2x4xf32>
    %78 = arith.subf %74, %75 : vector<2x4xf32>
    %79 = math.exp %78 : vector<2x4xf32>
    %80 = arith.addf %77, %79 : vector<2x4xf32>
    %81 = arith.divf %77, %80 : vector<2x4xf32>
    %82 = arith.divf %79, %80 : vector<2x4xf32>
    %cst_31 = arith.constant dense<0.000000e+00> : vector<2x32xf32>
    %83 = tpu.matmul %81, %25, %cst_31 {dimension_numbers = #tpu.dot_dimension_numbers<[1], [0], [0], [1], [0, 0, 1, 1], [], []>} : vector<2x4xf32>, vector<4x32xf32>, vector<2x32xf32> -> vector<2x32xf32>
    %84 = vector.extract_strided_slice %66 {offsets = [0, 0], sizes = [1, 32], strides = [1, 1]} : vector<2x32xf32> to vector<1x32xf32>
    %85 = vector.broadcast %84 : vector<1x32xf32> to vector<2x32xf32>
    %86 = arith.mulf %83, %85 : vector<2x32xf32>
    %cst_32 = arith.constant dense<0.000000e+00> : vector<2x32xf32>
    %87 = tpu.matmul %82, %25, %cst_32 {dimension_numbers = #tpu.dot_dimension_numbers<[1], [0], [0], [1], [0, 0, 1, 1], [], []>} : vector<2x4xf32>, vector<4x32xf32>, vector<2x32xf32> -> vector<2x32xf32>
    %88 = vector.extract_strided_slice %66 {offsets = [1, 0], sizes = [1, 32], strides = [1, 1]} : vector<2x32xf32> to vector<1x32xf32>
    %89 = vector.broadcast %88 : vector<1x32xf32> to vector<2x32xf32>
    %90 = arith.mulf %87, %89 : vector<2x32xf32>
    %91 = arith.addf %86, %90 : vector<2x32xf32>
    %c0_33 = arith.constant 0 : index
    %c96 = arith.constant 96 : index
    %92 = vector.load %arg2[%c0_33, %c96] : memref<256x128xf32, #tpu.memory_space<vmem>>, vector<32x32xf32>
    %cst_34 = arith.constant dense<0.000000e+00> : vector<2x32xf32>
    %93 = tpu.matmul %91, %92, %cst_34 {dimension_numbers = #tpu.dot_dimension_numbers<[1], [0], [0], [1], [0, 0, 1, 1], [], []>} : vector<2x32xf32>, vector<32x32xf32>, vector<2x32xf32> -> vector<2x32xf32>
    %c3 = arith.constant 3 : index
    %c0_35 = arith.constant 0 : index
    %94 = vector.load %arg3[%c3, %c0_35] : memref<22x96xf32, #tpu.memory_space<vmem>>, vector<1x32xf32>
    %95 = vector.broadcast %94 : vector<1x32xf32> to vector<2x32xf32>
    %96 = arith.addf %93, %95 : vector<2x32xf32>
    %97 = arith.addf %32, %96 : vector<2x32xf32>
    %c8 = arith.constant 8 : index
    %c0_36 = arith.constant 0 : index
    %98 = vector.load %arg3[%c8, %c0_36] : memref<22x96xf32, #tpu.memory_space<vmem>>, vector<1x32xf32>
    %c9 = arith.constant 9 : index
    %c0_37 = arith.constant 0 : index
    %99 = vector.load %arg3[%c9, %c0_37] : memref<22x96xf32, #tpu.memory_space<vmem>>, vector<1x32xf32>
    %cst_38 = arith.constant dense<0.000000e+00> : vector<2xf32>
    %100 = vector.multi_reduction <add>, %97, %cst_38 [1] : vector<2x32xf32> to vector<2xf32>
    %101 = vector.shape_cast %100 : vector<2xf32> to vector<2x1xf32>
    %cst_39 = arith.constant 3.200000e+01 : f32
    %102 = vector.broadcast %cst_39 : f32 to vector<2x1xf32>
    %103 = arith.divf %101, %102 : vector<2x1xf32>
    %104 = vector.broadcast %103 : vector<2x1xf32> to vector<2x32xf32>
    %105 = arith.subf %97, %104 : vector<2x32xf32>
    %106 = arith.mulf %105, %105 : vector<2x32xf32>
    %cst_40 = arith.constant dense<0.000000e+00> : vector<2xf32>
    %107 = vector.multi_reduction <add>, %106, %cst_40 [1] : vector<2x32xf32> to vector<2xf32>
    %108 = vector.shape_cast %107 : vector<2xf32> to vector<2x1xf32>
    %cst_41 = arith.constant 3.200000e+01 : f32
    %109 = vector.broadcast %cst_41 : f32 to vector<2x1xf32>
    %110 = arith.divf %108, %109 : vector<2x1xf32>
    %111 = vector.broadcast %103 : vector<2x1xf32> to vector<2x32xf32>
    %112 = arith.subf %97, %111 : vector<2x32xf32>
    %cst_42 = arith.constant 9.99999974E-6 : f32
    %113 = vector.broadcast %cst_42 : f32 to vector<2x1xf32>
    %114 = arith.addf %110, %113 : vector<2x1xf32>
    %115 = math.rsqrt %114 : vector<2x1xf32>
    %116 = vector.broadcast %115 : vector<2x1xf32> to vector<2x32xf32>
    %117 = arith.mulf %112, %116 : vector<2x32xf32>
    %118 = vector.broadcast %98 : vector<1x32xf32> to vector<2x32xf32>
    %119 = arith.mulf %117, %118 : vector<2x32xf32>
    %120 = vector.broadcast %99 : vector<1x32xf32> to vector<2x32xf32>
    %121 = arith.addf %119, %120 : vector<2x32xf32>
    %c32 = arith.constant 32 : index
    %c0_43 = arith.constant 0 : index
    %122 = vector.load %arg2[%c32, %c0_43] : memref<256x128xf32, #tpu.memory_space<vmem>>, vector<32x64xf32>
    %cst_44 = arith.constant dense<0.000000e+00> : vector<2x64xf32>
    %123 = tpu.matmul %121, %122, %cst_44 {dimension_numbers = #tpu.dot_dimension_numbers<[1], [0], [0], [1], [0, 0, 1, 1], [], []>} : vector<2x32xf32>, vector<32x64xf32>, vector<2x64xf32> -> vector<2x64xf32>
    %c4 = arith.constant 4 : index
    %c0_45 = arith.constant 0 : index
    %124 = vector.load %arg3[%c4, %c0_45] : memref<22x96xf32, #tpu.memory_space<vmem>>, vector<1x64xf32>
    %125 = vector.broadcast %124 : vector<1x64xf32> to vector<2x64xf32>
    %126 = arith.addf %123, %125 : vector<2x64xf32>
    %cst_46 = arith.constant 0.000000e+00 : f32
    %127 = vector.broadcast %cst_46 : f32 to vector<2x64xf32>
    %128 = arith.maximumf %126, %127 : vector<2x64xf32>
    %c64 = arith.constant 64 : index
    %c0_47 = arith.constant 0 : index
    %129 = vector.load %arg2[%c64, %c0_47] : memref<256x128xf32, #tpu.memory_space<vmem>>, vector<64x32xf32>
    %cst_48 = arith.constant dense<0.000000e+00> : vector<2x32xf32>
    %130 = tpu.matmul %128, %129, %cst_48 {dimension_numbers = #tpu.dot_dimension_numbers<[1], [0], [0], [1], [0, 0, 1, 1], [], []>} : vector<2x64xf32>, vector<64x32xf32>, vector<2x32xf32> -> vector<2x32xf32>
    %c5 = arith.constant 5 : index
    %c0_49 = arith.constant 0 : index
    %131 = vector.load %arg3[%c5, %c0_49] : memref<22x96xf32, #tpu.memory_space<vmem>>, vector<1x32xf32>
    %132 = vector.broadcast %131 : vector<1x32xf32> to vector<2x32xf32>
    %133 = arith.addf %130, %132 : vector<2x32xf32>
    %134 = arith.addf %97, %133 : vector<2x32xf32>
    %c14 = arith.constant 14 : index
    %c0_50 = arith.constant 0 : index
    %135 = vector.load %arg3[%c14, %c0_50] : memref<22x96xf32, #tpu.memory_space<vmem>>, vector<1x32xf32>
    %c15 = arith.constant 15 : index
    %c0_51 = arith.constant 0 : index
    %136 = vector.load %arg3[%c15, %c0_51] : memref<22x96xf32, #tpu.memory_space<vmem>>, vector<1x32xf32>
    %cst_52 = arith.constant dense<0.000000e+00> : vector<2xf32>
    %137 = vector.multi_reduction <add>, %134, %cst_52 [1] : vector<2x32xf32> to vector<2xf32>
    %138 = vector.shape_cast %137 : vector<2xf32> to vector<2x1xf32>
    %cst_53 = arith.constant 3.200000e+01 : f32
    %139 = vector.broadcast %cst_53 : f32 to vector<2x1xf32>
    %140 = arith.divf %138, %139 : vector<2x1xf32>
    %141 = vector.broadcast %140 : vector<2x1xf32> to vector<2x32xf32>
    %142 = arith.subf %134, %141 : vector<2x32xf32>
    %143 = arith.mulf %142, %142 : vector<2x32xf32>
    %cst_54 = arith.constant dense<0.000000e+00> : vector<2xf32>
    %144 = vector.multi_reduction <add>, %143, %cst_54 [1] : vector<2x32xf32> to vector<2xf32>
    %145 = vector.shape_cast %144 : vector<2xf32> to vector<2x1xf32>
    %cst_55 = arith.constant 3.200000e+01 : f32
    %146 = vector.broadcast %cst_55 : f32 to vector<2x1xf32>
    %147 = arith.divf %145, %146 : vector<2x1xf32>
    %148 = vector.broadcast %140 : vector<2x1xf32> to vector<2x32xf32>
    %149 = arith.subf %134, %148 : vector<2x32xf32>
    %cst_56 = arith.constant 9.99999974E-6 : f32
    %150 = vector.broadcast %cst_56 : f32 to vector<2x1xf32>
    %151 = arith.addf %147, %150 : vector<2x1xf32>
    %152 = math.rsqrt %151 : vector<2x1xf32>
    %153 = vector.broadcast %152 : vector<2x1xf32> to vector<2x32xf32>
    %154 = arith.mulf %149, %153 : vector<2x32xf32>
    %155 = vector.broadcast %135 : vector<1x32xf32> to vector<2x32xf32>
    %156 = arith.mulf %154, %155 : vector<2x32xf32>
    %157 = vector.broadcast %136 : vector<1x32xf32> to vector<2x32xf32>
    %158 = arith.addf %156, %157 : vector<2x32xf32>
    %c128 = arith.constant 128 : index
    %c0_57 = arith.constant 0 : index
    %159 = vector.load %arg2[%c128, %c0_57] : memref<256x128xf32, #tpu.memory_space<vmem>>, vector<32x96xf32>
    %cst_58 = arith.constant dense<0.000000e+00> : vector<2x96xf32>
    %160 = tpu.matmul %158, %159, %cst_58 {dimension_numbers = #tpu.dot_dimension_numbers<[1], [0], [0], [1], [0, 0, 1, 1], [], []>} : vector<2x32xf32>, vector<32x96xf32>, vector<2x96xf32> -> vector<2x96xf32>
    %c10 = arith.constant 10 : index
    %c0_59 = arith.constant 0 : index
    %161 = vector.load %arg3[%c10, %c0_59] : memref<22x96xf32, #tpu.memory_space<vmem>>, vector<1x96xf32>
    %162 = vector.broadcast %161 : vector<1x96xf32> to vector<2x96xf32>
    %163 = arith.addf %160, %162 : vector<2x96xf32>
    %164 = vector.extract_strided_slice %163 {offsets = [0, 0], sizes = [2, 32], strides = [1, 1]} : vector<2x96xf32> to vector<2x32xf32>
    %cst_60 = arith.constant 0.353553385 : f32
    %165 = vector.broadcast %cst_60 : f32 to vector<2x32xf32>
    %166 = arith.mulf %164, %165 : vector<2x32xf32>
    %167 = vector.extract_strided_slice %163 {offsets = [0, 32], sizes = [2, 32], strides = [1, 1]} : vector<2x96xf32> to vector<2x32xf32>
    %168 = vector.extract_strided_slice %163 {offsets = [0, 64], sizes = [2, 32], strides = [1, 1]} : vector<2x96xf32> to vector<2x32xf32>
    %169 = vector.extract_strided_slice %167 {offsets = [0, 0], sizes = [1, 32], strides = [1, 1]} : vector<2x32xf32> to vector<1x32xf32>
    %170 = vector.broadcast %169 : vector<1x32xf32> to vector<2x32xf32>
    %171 = arith.mulf %166, %170 : vector<2x32xf32>
    %cst_61 = arith.constant dense<0.000000e+00> : vector<2x4xf32>
    %172 = tpu.matmul %171, %12, %cst_61 {dimension_numbers = #tpu.dot_dimension_numbers<[1], [0], [0], [1], [0, 0, 1, 1], [], []>} : vector<2x32xf32>, vector<32x4xf32>, vector<2x4xf32> -> vector<2x4xf32>
    %173 = vector.extract_strided_slice %167 {offsets = [1, 0], sizes = [1, 32], strides = [1, 1]} : vector<2x32xf32> to vector<1x32xf32>
    %174 = vector.broadcast %173 : vector<1x32xf32> to vector<2x32xf32>
    %175 = arith.mulf %166, %174 : vector<2x32xf32>
    %cst_62 = arith.constant dense<0.000000e+00> : vector<2x4xf32>
    %176 = tpu.matmul %175, %12, %cst_62 {dimension_numbers = #tpu.dot_dimension_numbers<[1], [0], [0], [1], [0, 0, 1, 1], [], []>} : vector<2x32xf32>, vector<32x4xf32>, vector<2x4xf32> -> vector<2x4xf32>
    %177 = arith.maximumf %172, %176 : vector<2x4xf32>
    %178 = arith.subf %172, %177 : vector<2x4xf32>
    %179 = math.exp %178 : vector<2x4xf32>
    %180 = arith.subf %176, %177 : vector<2x4xf32>
    %181 = math.exp %180 : vector<2x4xf32>
    %182 = arith.addf %179, %181 : vector<2x4xf32>
    %183 = arith.divf %179, %182 : vector<2x4xf32>
    %184 = arith.divf %181, %182 : vector<2x4xf32>
    %cst_63 = arith.constant dense<0.000000e+00> : vector<2x32xf32>
    %185 = tpu.matmul %183, %25, %cst_63 {dimension_numbers = #tpu.dot_dimension_numbers<[1], [0], [0], [1], [0, 0, 1, 1], [], []>} : vector<2x4xf32>, vector<4x32xf32>, vector<2x32xf32> -> vector<2x32xf32>
    %186 = vector.extract_strided_slice %168 {offsets = [0, 0], sizes = [1, 32], strides = [1, 1]} : vector<2x32xf32> to vector<1x32xf32>
    %187 = vector.broadcast %186 : vector<1x32xf32> to vector<2x32xf32>
    %188 = arith.mulf %185, %187 : vector<2x32xf32>
    %cst_64 = arith.constant dense<0.000000e+00> : vector<2x32xf32>
    %189 = tpu.matmul %184, %25, %cst_64 {dimension_numbers = #tpu.dot_dimension_numbers<[1], [0], [0], [1], [0, 0, 1, 1], [], []>} : vector<2x4xf32>, vector<4x32xf32>, vector<2x32xf32> -> vector<2x32xf32>
    %190 = vector.extract_strided_slice %168 {offsets = [1, 0], sizes = [1, 32], strides = [1, 1]} : vector<2x32xf32> to vector<1x32xf32>
    %191 = vector.broadcast %190 : vector<1x32xf32> to vector<2x32xf32>
    %192 = arith.mulf %189, %191 : vector<2x32xf32>
    %193 = arith.addf %188, %192 : vector<2x32xf32>
    %c128_65 = arith.constant 128 : index
    %c96_66 = arith.constant 96 : index
    %194 = vector.load %arg2[%c128_65, %c96_66] : memref<256x128xf32, #tpu.memory_space<vmem>>, vector<32x32xf32>
    %cst_67 = arith.constant dense<0.000000e+00> : vector<2x32xf32>
    %195 = tpu.matmul %193, %194, %cst_67 {dimension_numbers = #tpu.dot_dimension_numbers<[1], [0], [0], [1], [0, 0, 1, 1], [], []>} : vector<2x32xf32>, vector<32x32xf32>, vector<2x32xf32> -> vector<2x32xf32>
    %c11 = arith.constant 11 : index
    %c0_68 = arith.constant 0 : index
    %196 = vector.load %arg3[%c11, %c0_68] : memref<22x96xf32, #tpu.memory_space<vmem>>, vector<1x32xf32>
    %197 = vector.broadcast %196 : vector<1x32xf32> to vector<2x32xf32>
    %198 = arith.addf %195, %197 : vector<2x32xf32>
    %199 = arith.addf %134, %198 : vector<2x32xf32>
    %c16 = arith.constant 16 : index
    %c0_69 = arith.constant 0 : index
    %200 = vector.load %arg3[%c16, %c0_69] : memref<22x96xf32, #tpu.memory_space<vmem>>, vector<1x32xf32>
    %c17 = arith.constant 17 : index
    %c0_70 = arith.constant 0 : index
    %201 = vector.load %arg3[%c17, %c0_70] : memref<22x96xf32, #tpu.memory_space<vmem>>, vector<1x32xf32>
    %cst_71 = arith.constant dense<0.000000e+00> : vector<2xf32>
    %202 = vector.multi_reduction <add>, %199, %cst_71 [1] : vector<2x32xf32> to vector<2xf32>
    %203 = vector.shape_cast %202 : vector<2xf32> to vector<2x1xf32>
    %cst_72 = arith.constant 3.200000e+01 : f32
    %204 = vector.broadcast %cst_72 : f32 to vector<2x1xf32>
    %205 = arith.divf %203, %204 : vector<2x1xf32>
    %206 = vector.broadcast %205 : vector<2x1xf32> to vector<2x32xf32>
    %207 = arith.subf %199, %206 : vector<2x32xf32>
    %208 = arith.mulf %207, %207 : vector<2x32xf32>
    %cst_73 = arith.constant dense<0.000000e+00> : vector<2xf32>
    %209 = vector.multi_reduction <add>, %208, %cst_73 [1] : vector<2x32xf32> to vector<2xf32>
    %210 = vector.shape_cast %209 : vector<2xf32> to vector<2x1xf32>
    %cst_74 = arith.constant 3.200000e+01 : f32
    %211 = vector.broadcast %cst_74 : f32 to vector<2x1xf32>
    %212 = arith.divf %210, %211 : vector<2x1xf32>
    %213 = vector.broadcast %205 : vector<2x1xf32> to vector<2x32xf32>
    %214 = arith.subf %199, %213 : vector<2x32xf32>
    %cst_75 = arith.constant 9.99999974E-6 : f32
    %215 = vector.broadcast %cst_75 : f32 to vector<2x1xf32>
    %216 = arith.addf %212, %215 : vector<2x1xf32>
    %217 = math.rsqrt %216 : vector<2x1xf32>
    %218 = vector.broadcast %217 : vector<2x1xf32> to vector<2x32xf32>
    %219 = arith.mulf %214, %218 : vector<2x32xf32>
    %220 = vector.broadcast %200 : vector<1x32xf32> to vector<2x32xf32>
    %221 = arith.mulf %219, %220 : vector<2x32xf32>
    %222 = vector.broadcast %201 : vector<1x32xf32> to vector<2x32xf32>
    %223 = arith.addf %221, %222 : vector<2x32xf32>
    %c160 = arith.constant 160 : index
    %c0_76 = arith.constant 0 : index
    %224 = vector.load %arg2[%c160, %c0_76] : memref<256x128xf32, #tpu.memory_space<vmem>>, vector<32x64xf32>
    %cst_77 = arith.constant dense<0.000000e+00> : vector<2x64xf32>
    %225 = tpu.matmul %223, %224, %cst_77 {dimension_numbers = #tpu.dot_dimension_numbers<[1], [0], [0], [1], [0, 0, 1, 1], [], []>} : vector<2x32xf32>, vector<32x64xf32>, vector<2x64xf32> -> vector<2x64xf32>
    %c12 = arith.constant 12 : index
    %c0_78 = arith.constant 0 : index
    %226 = vector.load %arg3[%c12, %c0_78] : memref<22x96xf32, #tpu.memory_space<vmem>>, vector<1x64xf32>
    %227 = vector.broadcast %226 : vector<1x64xf32> to vector<2x64xf32>
    %228 = arith.addf %225, %227 : vector<2x64xf32>
    %cst_79 = arith.constant 0.000000e+00 : f32
    %229 = vector.broadcast %cst_79 : f32 to vector<2x64xf32>
    %230 = arith.maximumf %228, %229 : vector<2x64xf32>
    %c192 = arith.constant 192 : index
    %c0_80 = arith.constant 0 : index
    %231 = vector.load %arg2[%c192, %c0_80] : memref<256x128xf32, #tpu.memory_space<vmem>>, vector<64x32xf32>
    %cst_81 = arith.constant dense<0.000000e+00> : vector<2x32xf32>
    %232 = tpu.matmul %230, %231, %cst_81 {dimension_numbers = #tpu.dot_dimension_numbers<[1], [0], [0], [1], [0, 0, 1, 1], [], []>} : vector<2x64xf32>, vector<64x32xf32>, vector<2x32xf32> -> vector<2x32xf32>
    %c13 = arith.constant 13 : index
    %c0_82 = arith.constant 0 : index
    %233 = vector.load %arg3[%c13, %c0_82] : memref<22x96xf32, #tpu.memory_space<vmem>>, vector<1x32xf32>
    %234 = vector.broadcast %233 : vector<1x32xf32> to vector<2x32xf32>
    %235 = arith.addf %232, %234 : vector<2x32xf32>
    %236 = arith.addf %199, %235 : vector<2x32xf32>
    %c18 = arith.constant 18 : index
    %c0_83 = arith.constant 0 : index
    %237 = vector.load %arg3[%c18, %c0_83] : memref<22x96xf32, #tpu.memory_space<vmem>>, vector<1x32xf32>
    %c19 = arith.constant 19 : index
    %c0_84 = arith.constant 0 : index
    %238 = vector.load %arg3[%c19, %c0_84] : memref<22x96xf32, #tpu.memory_space<vmem>>, vector<1x32xf32>
    %cst_85 = arith.constant dense<0.000000e+00> : vector<2xf32>
    %239 = vector.multi_reduction <add>, %236, %cst_85 [1] : vector<2x32xf32> to vector<2xf32>
    %240 = vector.shape_cast %239 : vector<2xf32> to vector<2x1xf32>
    %cst_86 = arith.constant 3.200000e+01 : f32
    %241 = vector.broadcast %cst_86 : f32 to vector<2x1xf32>
    %242 = arith.divf %240, %241 : vector<2x1xf32>
    %243 = vector.broadcast %242 : vector<2x1xf32> to vector<2x32xf32>
    %244 = arith.subf %236, %243 : vector<2x32xf32>
    %245 = arith.mulf %244, %244 : vector<2x32xf32>
    %cst_87 = arith.constant dense<0.000000e+00> : vector<2xf32>
    %246 = vector.multi_reduction <add>, %245, %cst_87 [1] : vector<2x32xf32> to vector<2xf32>
    %247 = vector.shape_cast %246 : vector<2xf32> to vector<2x1xf32>
    %cst_88 = arith.constant 3.200000e+01 : f32
    %248 = vector.broadcast %cst_88 : f32 to vector<2x1xf32>
    %249 = arith.divf %247, %248 : vector<2x1xf32>
    %250 = vector.broadcast %242 : vector<2x1xf32> to vector<2x32xf32>
    %251 = arith.subf %236, %250 : vector<2x32xf32>
    %cst_89 = arith.constant 9.99999974E-6 : f32
    %252 = vector.broadcast %cst_89 : f32 to vector<2x1xf32>
    %253 = arith.addf %249, %252 : vector<2x1xf32>
    %254 = math.rsqrt %253 : vector<2x1xf32>
    %255 = vector.broadcast %254 : vector<2x1xf32> to vector<2x32xf32>
    %256 = arith.mulf %251, %255 : vector<2x32xf32>
    %257 = vector.broadcast %237 : vector<1x32xf32> to vector<2x32xf32>
    %258 = arith.mulf %256, %257 : vector<2x32xf32>
    %259 = vector.broadcast %238 : vector<1x32xf32> to vector<2x32xf32>
    %260 = arith.addf %258, %259 : vector<2x32xf32>
    %c20 = arith.constant 20 : index
    %c0_90 = arith.constant 0 : index
    %261 = vector.load %arg3[%c20, %c0_90] : memref<22x96xf32, #tpu.memory_space<vmem>>, vector<1x32xf32>
    %c21 = arith.constant 21 : index
    %c0_91 = arith.constant 0 : index
    %262 = vector.load %arg3[%c21, %c0_91] : memref<22x96xf32, #tpu.memory_space<vmem>>, vector<1x32xf32>
    %cst_92 = arith.constant dense<0.000000e+00> : vector<2xf32>
    %263 = vector.multi_reduction <add>, %260, %cst_92 [1] : vector<2x32xf32> to vector<2xf32>
    %264 = vector.shape_cast %263 : vector<2xf32> to vector<2x1xf32>
    %cst_93 = arith.constant 3.200000e+01 : f32
    %265 = vector.broadcast %cst_93 : f32 to vector<2x1xf32>
    %266 = arith.divf %264, %265 : vector<2x1xf32>
    %267 = vector.broadcast %266 : vector<2x1xf32> to vector<2x32xf32>
    %268 = arith.subf %260, %267 : vector<2x32xf32>
    %269 = arith.mulf %268, %268 : vector<2x32xf32>
    %cst_94 = arith.constant dense<0.000000e+00> : vector<2xf32>
    %270 = vector.multi_reduction <add>, %269, %cst_94 [1] : vector<2x32xf32> to vector<2xf32>
    %271 = vector.shape_cast %270 : vector<2xf32> to vector<2x1xf32>
    %cst_95 = arith.constant 3.200000e+01 : f32
    %272 = vector.broadcast %cst_95 : f32 to vector<2x1xf32>
    %273 = arith.divf %271, %272 : vector<2x1xf32>
    %274 = vector.broadcast %266 : vector<2x1xf32> to vector<2x32xf32>
    %275 = arith.subf %260, %274 : vector<2x32xf32>
    %cst_96 = arith.constant 9.99999974E-6 : f32
    %276 = vector.broadcast %cst_96 : f32 to vector<2x1xf32>
    %277 = arith.addf %273, %276 : vector<2x1xf32>
    %278 = math.rsqrt %277 : vector<2x1xf32>
    %279 = vector.broadcast %278 : vector<2x1xf32> to vector<2x32xf32>
    %280 = arith.mulf %275, %279 : vector<2x32xf32>
    %281 = vector.broadcast %261 : vector<1x32xf32> to vector<2x32xf32>
    %282 = arith.mulf %280, %281 : vector<2x32xf32>
    %283 = vector.broadcast %262 : vector<1x32xf32> to vector<2x32xf32>
    %284 = arith.addf %282, %283 : vector<2x32xf32>
    %285 = vector.extract_strided_slice %284 {offsets = [0, 0], sizes = [1, 32], strides = [1, 1]} : vector<2x32xf32> to vector<1x32xf32>
    %c0_97 = arith.constant 0 : index
    %c0_98 = arith.constant 0 : index
    %286 = vector.load %arg4[%c0_97, %c0_98] : memref<1x32xf32, #tpu.memory_space<vmem>>, vector<1x32xf32>
    tpu.vector_store %arg4[%c0_97, %c0_98], %285 {strides = array<i32>} : memref<1x32xf32, #tpu.memory_space<vmem>>, vector<1x32xf32>,
    return
  }
}

</mosaic_0001>

<llo_original>
// kernel: transformer_unary_agg_forward.1
$region0: #{transformer_unary_agg_forward.1}
  #allocation0 [shape = 'u32[]', space=smem, size = 0x4, offset = 0x4, fixed_abs, tag = 'smem constant byte address 0x4 - core index']
  #allocation1 [shape = 'u32[144,128]{1,0:T(1,128)}', space=vmem, size = 0x12000, scoped, tag = 'internal scratch']
  #allocation2 [shape = 'f32[2,32]{1,0:T(2,128)}', space=vmem, size = 0x400, scoped, tag = 'scratch operand']
  %s0 = inlined_call_operand.vmem [shape: f32[1,32], index: 0, kind: input, shape index: {}]
  %s1 = inlined_call_operand.vmem [shape: f32[1,32], index: 1, kind: input, shape index: {}]
  %s2 = inlined_call_operand.hbm [shape: f32[256,128], index: 2, kind: input, shape index: {}]
  %s3 = inlined_call_operand.hbm [shape: f32[22,96], index: 3, kind: input, shape index: {}]
  %s4 = inlined_call_operand.hbm [shape: f32[1,32], index: 4, kind: output, shape index: {}]
  %s5 = sld [smem:[#allocation0]]
  $region34: #{transformer_unary_agg_forward.1} parent=0
    _
  %s7 = ssub.s32 1, %s5
  %s8 = scalar_select 0, %s7, %s5
  $region1: #{transformer_unary_agg_forward.1} parent=0
    #allocation3 [shape = 'u8[131072]{0}', space=vmem, size = 0x20000, scoped, tag = 'input window, operand 2, single buffered']
    #allocation4 [shape = 's32[1]{0}', space=sflag, size = 0x4, scoped, tag = 'scoped memory for transformer_unary_agg_forward.1']
    #allocation5 [shape = 's32[1]{0}', space=sflag, size = 0x4, scoped, tag = 'scoped memory for transformer_unary_agg_forward.1']
    #allocation6 [shape = 'u8[12288]{0}', space=vmem, size = 0x3000, scoped, tag = 'input window, operand 3, single buffered']
    #allocation7 [shape = 's32[1]{0}', space=sflag, size = 0x4, scoped, tag = 'scoped memory for transformer_unary_agg_forward.1']
    #allocation8 [shape = 'u8[512]{0}', space=vmem, size = 0x400, scoped, tag = 'output window, operand 0, single buffered']
    %9 = vsyncpa [#allocation4], 0
    %10 = vsyncpa [#allocation7], 0
    %11 = vsyncpa [#allocation5], 0
    // Predicated region
    $region2: #{transformer_unary_agg_forward.1} parent=1 // pred_check
      _
    $region3: #{transformer_unary_agg_forward.1} parent=1 // pred_check_branch
      %13 = sbr.rel (0) target = $region5
    $region4: #{transformer_unary_agg_forward.1} parent=1 // pred_region
      _
    $region5: #{transformer_unary_agg_forward.1} parent=1 // pred_fallthru
      _
    // Predicated region
    $region6: #{transformer_unary_agg_forward.1} parent=1 // pred_check
      _
    $region7: #{transformer_unary_agg_forward.1} parent=1 // pred_check_branch
      %15 = sbr.rel (0) target = $region9
    $region8: #{transformer_unary_agg_forward.1} parent=1 // pred_region
      _
    $region9: #{transformer_unary_agg_forward.1} parent=1 // pred_fallthru
      _
    // Predicated region
    $region10: #{transformer_unary_agg_forward.1} parent=1 // pred_check
      _
    $region11: #{transformer_unary_agg_forward.1} parent=1 // pred_check_branch
      %17 = sbr.rel (0) target = $region13
    $region12: #{transformer_unary_agg_forward.1} parent=1 // pred_region
      %s19 = ssub.s32 4096, 4096
      %20 = vsyncadd [#allocation4], %s19
      %s21 = sshll.u32 [#allocation3], 4
      %s22 = int_to_ptr.vmem [resolvable:$true] %s21
      %27 = dma.hbm_to_vmem [thread:$0]  %s2, 4096, %s22, [#allocation4], 128, 128, 8
    $region13: #{transformer_unary_agg_forward.1} parent=1 // pred_fallthru
      _
    // Predicated region
    $region14: #{transformer_unary_agg_forward.1} parent=1 // pred_check
      _
    $region15: #{transformer_unary_agg_forward.1} parent=1 // pred_check_branch
      %29 = sbr.rel (0) target = $region17
    $region16: #{transformer_unary_agg_forward.1} parent=1 // pred_region
      %s31 = ssub.s32 384, 384
      %32 = vsyncadd [#allocation7], %s31
      %s33 = sshll.u32 [#allocation6], 4
      %s34 = int_to_ptr.vmem [resolvable:$true] %s33
      %39 = dma.hbm_to_vmem [thread:$0]  %s3, 384, %s34, [#allocation7], 128, 128, 8
    $region17: #{transformer_unary_agg_forward.1} parent=1 // pred_fallthru
      _
    // Predicated region
    $region18: #{transformer_unary_agg_forward.1} parent=1 // pred_check
      _
    $region19: #{transformer_unary_agg_forward.1} parent=1 // pred_check_branch
      %41 = sbr.rel (0) target = $region21
    $region20: #{transformer_unary_agg_forward.1} parent=1 // pred_region
      %42 = dma.done [#allocation4], 4096
    $region21: #{transformer_unary_agg_forward.1} parent=1 // pred_fallthru
      _
    // Predicated region
    $region22: #{transformer_unary_agg_forward.1} parent=1 // pred_check
      _
    $region23: #{transformer_unary_agg_forward.1} parent=1 // pred_check_branch
      %44 = sbr.rel (0) target = $region25
    $region24: #{transformer_unary_agg_forward.1} parent=1 // pred_region
      %45 = dma.done [#allocation7], 384
    $region25: #{transformer_unary_agg_forward.1} parent=1 // pred_fallthru
      _
    %v46 = vlaneseq
    %v47 = vshrl.u32 %v46, 7
    %v48 = vadd.s32 %v47, 8
    %v49 = vadd.s32 %v47, 16
    %v50 = vadd.s32 %v47, 24
    %v51 = vlaneseq
    %v52 = vand.u32 %v51, 127
    %v53 = vmul.u32 %v52, 8
    %v54 = vsub.s32 %v47, %v53
    %v55 = vsub.s32 %v48, %v53
    %v56 = vsub.s32 %v49, %v53
    %v57 = vsub.s32 %v50, %v53
    %vm58 = vcmp.ge.s32.totalorder %v54, 0
    %vm59 = vcmp.ge.s32.totalorder %v55, 0
    %vm60 = vcmp.ge.s32.totalorder %v56, 0
    %vm61 = vcmp.ge.s32.totalorder %v57, 0
    %vm62 = vcmp.lt.s32.totalorder %v54, 8
    %vm63 = vcmp.lt.s32.totalorder %v55, 8
    %vm64 = vcmp.lt.s32.totalorder %v56, 8
    %vm65 = vcmp.lt.s32.totalorder %v57, 8
    %vm66 = vmand %vm58, %vm62
    %vm67 = vmand %vm59, %vm63
    %vm68 = vmand %vm60, %vm64
    %vm69 = vmand %vm61, %vm65
    %v70 = vsel %vm66, 1.0, 0.0
    %v71 = vsel %vm67, 1.0, 0.0
    %v72 = vsel %vm68, 1.0, 0.0
    %v73 = vsel %vm69, 1.0, 0.0
    %v74 = vmul.u32 %v47, 8
    %v75 = vsub.s32 %v52, %v74
    %vm76 = vcmp.ge.s32.totalorder %v75, 0
    %vm77 = vcmp.lt.s32.totalorder %v75, 8
    %vm78 = vmand %vm76, %vm77
    %v79 = vsel %vm78, 1.0, 0.0
    %v80 = vld [vmem:[%s0] sm:$0x1]
    %vm81 = vcmask 253952
    %82 = vst.msk [vmem:[#allocation2] sm:$0x1] %vm81, %v80
    %v83 = vld [vmem:[%s1] sm:$0x1]
    %84 = vst.msk [vmem:[#allocation2 + $0x1] sm:$0x1] %vm81, %v83
    %v85 = vld [vmem:[#allocation2] sm:$0x3]
    %v86 = vld [vmem:[#allocation6] sm:$0x3]
    %v87 = vadd.f32 %v85, %v86
    %v88 = vld [vmem:[#allocation6 + $0x6] sm:$0x1]
    %v89 = vld [vmem:[#allocation6 + $0x7] sm:$0x1]
    %vm90 = vcmask 254976
    %v91 = vsel %vm90, %v87, 0.0
    %92 = vadd.xlane.f32.xlu0 %v91
    %v93 = vpop.xlane.xlu0 %92
    %v94 = vrcp.pop 32.0
    %v95 = vmul.f32 %v93, %v94
    %v96 = vsub.f32 %v87, %v95
    %v97 = vmul.f32 %v96, %v96
    %v98 = vsel %vm90, %v97, 0.0
    %99 = vadd.xlane.f32.xlu0 %v98
    %v100 = vpop.xlane.xlu0 %99
    %v101 = vmul.f32 %v100, %v94
    %v102 = vadd.f32 %v101, 1e-05
    %v103 = vrsqrt.pop %v102
    %v104 = vmul.f32 %v96, %v103
    %v105 = vlaneseq
    %v106 = vshrl.u32 %v105, 7
    %v107 = vsub.s32 0, %v106
    %v108 = vrot.slane %v88, %v107
    %v109 = vmul.f32 %v104, %v108
    %v110 = vlaneseq
    %v111 = vshrl.u32 %v110, 7
    %v112 = vsub.s32 0, %v111
    %v113 = vrot.slane %v89, %v112
    %v114 = vadd.f32 %v109, %v113
    %v115 = vld [vmem:[#allocation3] sm:$0xff]
    %v116 = vld [vmem:[#allocation3 + $0x8] sm:$0xff]
    %v117 = vld [vmem:[#allocation3 + $0x10] sm:$0xff]
    %v118 = vld [vmem:[#allocation3 + $0x18] sm:$0xff]
    %v119 = vld [vmem:[#allocation6 + $0x2] sm:$0x1]
    %v120 = vlaneseq
    %v121 = vshrl.u32 %v120, 7
    %v122 = vsub.s32 0, %v121
    %v123 = vrot.slane %v119, %v122
    %vm124 = vcmask 261120
    %v126 = vsel %vm124, %v114, 0
    %128 = vmatprep.subr.mxu0 0.0
    %129 = vmatpush1.msra.mxu0 0.0
    %130 = vmatprep.subr.mxu0 0.0
    %131 = vmatpush1.msra.mxu0 0.0
    %132 = vmatprep.subr.mxu0 0.0
    %133 = vmatpush1.msra.mxu0 0.0
    %134 = vmatprep.subr.mxu0 0.0
    %135 = vmatpush1.msra.mxu0 0.0
    %136 = vmatprep.subr.mxu0 0.0
    %137 = vmatpush1.msra.mxu0 0.0
    %138 = vmatprep.subr.mxu0 0.0
    %139 = vmatpush1.msra.mxu0 0.0
    %140 = vmatprep.subr.mxu0 0.0
    %141 = vmatpush1.msra.mxu0 0.0
    %142 = vmatprep.subr.mxu0 0.0
    %143 = vmatpush1.msra.mxu0 0.0
    %144 = vmatprep.subr.mxu0 0.0
    %145 = vmatpush1.msra.mxu0 0.0
    %146 = vmatprep.subr.mxu0 0.0
    %147 = vmatpush1.msra.mxu0 0.0
    %148 = vmatprep.subr.mxu0 0.0
    %149 = vmatpush1.msra.mxu0 0.0
    %150 = vmatprep.subr.mxu0 0.0
    %151 = vmatpush1.msra.mxu0 0.0
    %152 = vmatprep.subr.mxu0 0.0
    %153 = vmatpush1.msra.mxu0 %v118
    %154 = vmatprep.subr.mxu0 0.0
    %155 = vmatpush1.msra.mxu0 %v117
    %156 = vmatprep.subr.mxu0 0.0
    %157 = vmatpush1.msra.mxu0 %v116
    %158 = vmatprep.subr.mxu0 0.0
    %159 = vmatpush1.msra.mxu0 %v115
    %160 = vmatprep.subr.mxu0 0.0
    %161 = vmatpush2.msra.mxu0 0.0
    %162 = vmatprep.subr.mxu0 0.0
    %163 = vmatpush2.msra.mxu0 0.0
    %164 = vmatprep.subr.mxu0 0.0
    %165 = vmatpush2.msra.mxu0 0.0
    %166 = vmatprep.subr.mxu0 0.0
    %167 = vmatpush2.msra.mxu0 0.0
    %168 = vmatprep.subr.mxu0 0.0
    %169 = vmatpush2.msra.mxu0 0.0
    %170 = vmatprep.subr.mxu0 0.0
    %171 = vmatpush2.msra.mxu0 0.0
    %172 = vmatprep.subr.mxu0 0.0
    %173 = vmatpush2.msra.mxu0 0.0
    %174 = vmatprep.subr.mxu0 0.0
    %175 = vmatpush2.msra.mxu0 0.0
    %176 = vmatprep.subr.mxu0 0.0
    %177 = vmatpush2.msra.mxu0 0.0
    %178 = vmatprep.subr.mxu0 0.0
    %179 = vmatpush2.msra.mxu0 0.0
    %180 = vmatprep.subr.mxu0 0.0
    %181 = vmatpush2.msra.mxu0 0.0
    %182 = vmatprep.subr.mxu0 0.0
    %183 = vmatpush2.msra.mxu0 0.0
    %184 = vmatprep.subr.mxu0 0.0
    %185 = vmatpush2.msra.mxu0 0.0
    %186 = vmatprep.subr.mxu0 0.0
    %187 = vmatpush2.msra.mxu0 0.0
    %188 = vmatprep.subr.mxu0 0.0
    %189 = vmatpush2.msra.mxu0 0.0
    %190 = vmatprep.subr.mxu0 0.0
    %191 = vmatpush2.msra.mxu0 0.0
    %192 = vmatprep.mubr.f32.mxu0 0.0
    %193 = vmatmul.mubr.f32.gmra.mxu0 %v126
    %v194 = vpop.f32.mrf.mxu0
    %v195 = vadd.f32 %v123, %v194
    %v196 = vpop.f32.mrf.mxu0
    %197 = vdwg.mxu0
    %v198 = vmul.f32 %v195, 0.35355338
    %v199 = vlaneseq
    %v200 = vshrl.u32 %v199, 7
    %v201 = vsub.s32 0, %v200
    %v202 = vrot.slane %v195, %v201
    %204 = vrot.lane.b32.xlu0 %v202, 96
    %v205 = vpop.permute.xlu0 %204
    %v207 = vmul.f32 %v198, %v205
    %v209 = vsel %vm124, %v207, 0
    %211 = vmatprep.subr.mxu0 0.0
    %212 = vmatpush1.msra.mxu0 0.0
    %213 = vmatprep.subr.mxu0 0.0
    %214 = vmatpush1.msra.mxu0 0.0
    %215 = vmatprep.subr.mxu0 0.0
    %216 = vmatpush1.msra.mxu0 0.0
    %217 = vmatprep.subr.mxu0 0.0
    %218 = vmatpush1.msra.mxu0 0.0
    %219 = vmatprep.subr.mxu0 0.0
    %220 = vmatpush1.msra.mxu0 0.0
    %221 = vmatprep.subr.mxu0 0.0
    %222 = vmatpush1.msra.mxu0 0.0
    %223 = vmatprep.subr.mxu0 0.0
    %224 = vmatpush1.msra.mxu0 0.0
    %225 = vmatprep.subr.mxu0 0.0
    %226 = vmatpush1.msra.mxu0 0.0
    %227 = vmatprep.subr.mxu0 0.0
    %228 = vmatpush1.msra.mxu0 0.0
    %229 = vmatprep.subr.mxu0 0.0
    %230 = vmatpush1.msra.mxu0 0.0
    %231 = vmatprep.subr.mxu0 0.0
    %232 = vmatpush1.msra.mxu0 0.0
    %233 = vmatprep.subr.mxu0 0.0
    %234 = vmatpush1.msra.mxu0 0.0
    %235 = vmatprep.subr.mxu0 0.0
    %236 = vmatpush1.msra.mxu0 %v73
    %237 = vmatprep.subr.mxu0 0.0
    %238 = vmatpush1.msra.mxu0 %v72
    %239 = vmatprep.subr.mxu0 0.0
    %240 = vmatpush1.msra.mxu0 %v71
    %241 = vmatprep.subr.mxu0 0.0
    %242 = vmatpush1.msra.mxu0 %v70
    %243 = vmatprep.subr.mxu0 0.0
    %244 = vmatpush2.msra.mxu0 0.0
    %245 = vmatprep.subr.mxu0 0.0
    %246 = vmatpush2.msra.mxu0 0.0
    %247 = vmatprep.subr.mxu0 0.0
    %248 = vmatpush2.msra.mxu0 0.0
    %249 = vmatprep.subr.mxu0 0.0
    %250 = vmatpush2.msra.mxu0 0.0
    %251 = vmatprep.subr.mxu0 0.0
    %252 = vmatpush2.msra.mxu0 0.0
    %253 = vmatprep.subr.mxu0 0.0
    %254 = vmatpush2.msra.mxu0 0.0
    %255 = vmatprep.subr.mxu0 0.0
    %256 = vmatpush2.msra.mxu0 0.0
    %257 = vmatprep.subr.mxu0 0.0
    %258 = vmatpush2.msra.mxu0 0.0
    %259 = vmatprep.subr.mxu0 0.0
    %260 = vmatpush2.msra.mxu0 0.0
    %261 = vmatprep.subr.mxu0 0.0
    %262 = vmatpush2.msra.mxu0 0.0
    %263 = vmatprep.subr.mxu0 0.0
    %264 = vmatpush2.msra.mxu0 0.0
    %265 = vmatprep.subr.mxu0 0.0
    %266 = vmatpush2.msra.mxu0 0.0
    %267 = vmatprep.subr.mxu0 0.0
    %268 = vmatpush2.msra.mxu0 0.0
    %269 = vmatprep.subr.mxu0 0.0
    %270 = vmatpush2.msra.mxu0 0.0
    %271 = vmatprep.subr.mxu0 0.0
    %272 = vmatpush2.msra.mxu0 0.0
    %273 = vmatprep.subr.mxu0 0.0
    %274 = vmatpush2.msra.mxu0 0.0
    %275 = vmatprep.mubr.f32.mxu0 0.0
    %276 = vmatmul.mubr.f32.gmra.mxu0 %v209
    %v277 = vpop.f32.mrf.mxu0
    %v278 = vadd.f32 0.0, %v277
    %v279 = vpop.f32.mrf.mxu0
    %280 = vdwg.mxu0
    %v281 = vlaneseq
    %v282 = vshrl.u32 %v281, 7
    %v283 = vsub.s32 1, %v282
    %v284 = vrot.slane %v195, %v283
    %286 = vrot.lane.b32.xlu0 %v284, 96
    %v287 = vpop.permute.xlu0 %286
    %v289 = vmul.f32 %v198, %v287
    %v291 = vsel %vm124, %v289, 0
    %293 = vmatprep.subr.mxu0 0.0
    %294 = vmatpush1.msra.mxu0 0.0
    %295 = vmatprep.subr.mxu0 0.0
    %296 = vmatpush1.msra.mxu0 0.0
    %297 = vmatprep.subr.mxu0 0.0
    %298 = vmatpush1.msra.mxu0 0.0
    %299 = vmatprep.subr.mxu0 0.0
    %300 = vmatpush1.msra.mxu0 0.0
    %301 = vmatprep.subr.mxu0 0.0
    %302 = vmatpush1.msra.mxu0 0.0
    %303 = vmatprep.subr.mxu0 0.0
    %304 = vmatpush1.msra.mxu0 0.0
    %305 = vmatprep.subr.mxu0 0.0
    %306 = vmatpush1.msra.mxu0 0.0
    %307 = vmatprep.subr.mxu0 0.0
    %308 = vmatpush1.msra.mxu0 0.0
    %309 = vmatprep.subr.mxu0 0.0
    %310 = vmatpush1.msra.mxu0 0.0
    %311 = vmatprep.subr.mxu0 0.0
    %312 = vmatpush1.msra.mxu0 0.0
    %313 = vmatprep.subr.mxu0 0.0
    %314 = vmatpush1.msra.mxu0 0.0
    %315 = vmatprep.subr.mxu0 0.0
    %316 = vmatpush1.msra.mxu0 0.0
    %317 = vmatprep.subr.mxu0 0.0
    %318 = vmatpush1.msra.mxu0 %v73
    %319 = vmatprep.subr.mxu0 0.0
    %320 = vmatpush1.msra.mxu0 %v72
    %321 = vmatprep.subr.mxu0 0.0
    %322 = vmatpush1.msra.mxu0 %v71
    %323 = vmatprep.subr.mxu0 0.0
    %324 = vmatpush1.msra.mxu0 %v70
    %325 = vmatprep.subr.mxu0 0.0
    %326 = vmatpush2.msra.mxu0 0.0
    %327 = vmatprep.subr.mxu0 0.0
    %328 = vmatpush2.msra.mxu0 0.0
    %329 = vmatprep.subr.mxu0 0.0
    %330 = vmatpush2.msra.mxu0 0.0
    %331 = vmatprep.subr.mxu0 0.0
    %332 = vmatpush2.msra.mxu0 0.0
    %333 = vmatprep.subr.mxu0 0.0
    %334 = vmatpush2.msra.mxu0 0.0
    %335 = vmatprep.subr.mxu0 0.0
    %336 = vmatpush2.msra.mxu0 0.0
    %337 = vmatprep.subr.mxu0 0.0
    %338 = vmatpush2.msra.mxu0 0.0
    %339 = vmatprep.subr.mxu0 0.0
    %340 = vmatpush2.msra.mxu0 0.0
    %341 = vmatprep.subr.mxu0 0.0
    %342 = vmatpush2.msra.mxu0 0.0
    %343 = vmatprep.subr.mxu0 0.0
    %344 = vmatpush2.msra.mxu0 0.0
    %345 = vmatprep.subr.mxu0 0.0
    %346 = vmatpush2.msra.mxu0 0.0
    %347 = vmatprep.subr.mxu0 0.0
    %348 = vmatpush2.msra.mxu0 0.0
    %349 = vmatprep.subr.mxu0 0.0
    %350 = vmatpush2.msra.mxu0 0.0
    %351 = vmatprep.subr.mxu0 0.0
    %352 = vmatpush2.msra.mxu0 0.0
    %353 = vmatprep.subr.mxu0 0.0
    %354 = vmatpush2.msra.mxu0 0.0
    %355 = vmatprep.subr.mxu0 0.0
    %356 = vmatpush2.msra.mxu0 0.0
    %357 = vmatprep.mubr.f32.mxu0 0.0
    %358 = vmatmul.mubr.f32.gmra.mxu0 %v291
    %v359 = vpop.f32.mrf.mxu0
    %v360 = vadd.f32 0.0, %v359
    %v361 = vpop.f32.mrf.mxu0
    %362 = vdwg.mxu0
    %v363 = vmax.f32 %v278, %v360
    %v364 = vsub.f32 %v278, %v363
    %v365 = vmul.f32 %v364, 1.442695
    %v366 = vpow.pop %v365
    %v367 = vsub.f32 %v360, %v363
    %v368 = vmul.f32 %v367, 1.442695
    %v369 = vpow.pop %v368
    %v370 = vadd.f32 %v366, %v369
    %v371 = vrcp.pop %v370
    %v372 = vmul.f32 %v366, %v371
    %v373 = vmul.f32 %v369, %v371
    %vm374 = vcmask 31744
    %v376 = vsel %vm374, %v372, 0
    %vm378 = vcmask 1043456
    %v380 = vsel %vm378, %v79, 0
    %382 = vmatprep.subr.mxu0 0.0
    %383 = vmatpush1.msra.mxu0 0.0
    %384 = vmatprep.subr.mxu0 0.0
    %385 = vmatpush1.msra.mxu0 0.0
    %386 = vmatprep.subr.mxu0 0.0
    %387 = vmatpush1.msra.mxu0 0.0
    %388 = vmatprep.subr.mxu0 0.0
    %389 = vmatpush1.msra.mxu0 0.0
    %390 = vmatprep.subr.mxu0 0.0
    %391 = vmatpush1.msra.mxu0 0.0
    %392 = vmatprep.subr.mxu0 0.0
    %393 = vmatpush1.msra.mxu0 0.0
    %394 = vmatprep.subr.mxu0 0.0
    %395 = vmatpush1.msra.mxu0 0.0
    %396 = vmatprep.subr.mxu0 0.0
    %397 = vmatpush1.msra.mxu0 0.0
    %398 = vmatprep.subr.mxu0 0.0
    %399 = vmatpush1.msra.mxu0 0.0
    %400 = vmatprep.subr.mxu0 0.0
    %401 = vmatpush1.msra.mxu0 0.0
    %402 = vmatprep.subr.mxu0 0.0
    %403 = vmatpush1.msra.mxu0 0.0
    %404 = vmatprep.subr.mxu0 0.0
    %405 = vmatpush1.msra.mxu0 0.0
    %406 = vmatprep.subr.mxu0 0.0
    %407 = vmatpush1.msra.mxu0 0.0
    %408 = vmatprep.subr.mxu0 0.0
    %409 = vmatpush1.msra.mxu0 0.0
    %410 = vmatprep.subr.mxu0 0.0
    %411 = vmatpush1.msra.mxu0 0.0
    %412 = vmatprep.subr.mxu0 0.0
    %413 = vmatpush1.msra.mxu0 %v380
    %414 = vmatprep.subr.mxu0 0.0
    %415 = vmatpush2.msra.mxu0 0.0
    %416 = vmatprep.subr.mxu0 0.0
    %417 = vmatpush2.msra.mxu0 0.0
    %418 = vmatprep.subr.mxu0 0.0
    %419 = vmatpush2.msra.mxu0 0.0
    %420 = vmatprep.subr.mxu0 0.0
    %421 = vmatpush2.msra.mxu0 0.0
    %422 = vmatprep.subr.mxu0 0.0
    %423 = vmatpush2.msra.mxu0 0.0
    %424 = vmatprep.subr.mxu0 0.0
    %425 = vmatpush2.msra.mxu0 0.0
    %426 = vmatprep.subr.mxu0 0.0
    %427 = vmatpush2.msra.mxu0 0.0
    %428 = vmatprep.subr.mxu0 0.0
    %429 = vmatpush2.msra.mxu0 0.0
    %430 = vmatprep.subr.mxu0 0.0
    %431 = vmatpush2.msra.mxu0 0.0
    %432 = vmatprep.subr.mxu0 0.0
    %433 = vmatpush2.msra.mxu0 0.0
    %434 = vmatprep.subr.mxu0 0.0
    %435 = vmatpush2.msra.mxu0 0.0
    %436 = vmatprep.subr.mxu0 0.0
    %437 = vmatpush2.msra.mxu0 0.0
    %438 = vmatprep.subr.mxu0 0.0
    %439 = vmatpush2.msra.mxu0 0.0
    %440 = vmatprep.subr.mxu0 0.0
    %441 = vmatpush2.msra.mxu0 0.0
    %442 = vmatprep.subr.mxu0 0.0
    %443 = vmatpush2.msra.mxu0 0.0
    %444 = vmatprep.subr.mxu0 0.0
    %445 = vmatpush2.msra.mxu0 0.0
    %446 = vmatprep.mubr.f32.mxu0 0.0
    %447 = vmatmul.mubr.f32.gmra.mxu0 %v376
    %v448 = vpop.f32.mrf.mxu0
    %v449 = vadd.f32 0.0, %v448
    %v450 = vpop.f32.mrf.mxu0
    %451 = vdwg.mxu0
    %452 = vrot.lane.b32.xlu0 %v202, 64
    %v453 = vpop.permute.xlu0 %452
    %v455 = vmul.f32 %v449, %v453
    %v457 = vsel %vm374, %v373, 0
    %459 = vmatprep.subr.mxu0 0.0
    %460 = vmatpush1.msra.mxu0 0.0
    %461 = vmatprep.subr.mxu0 0.0
    %462 = vmatpush1.msra.mxu0 0.0
    %463 = vmatprep.subr.mxu0 0.0
    %464 = vmatpush1.msra.mxu0 0.0
    %465 = vmatprep.subr.mxu0 0.0
    %466 = vmatpush1.msra.mxu0 0.0
    %467 = vmatprep.subr.mxu0 0.0
    %468 = vmatpush1.msra.mxu0 0.0
    %469 = vmatprep.subr.mxu0 0.0
    %470 = vmatpush1.msra.mxu0 0.0
    %471 = vmatprep.subr.mxu0 0.0
    %472 = vmatpush1.msra.mxu0 0.0
    %473 = vmatprep.subr.mxu0 0.0
    %474 = vmatpush1.msra.mxu0 0.0
    %475 = vmatprep.subr.mxu0 0.0
    %476 = vmatpush1.msra.mxu0 0.0
    %477 = vmatprep.subr.mxu0 0.0
    %478 = vmatpush1.msra.mxu0 0.0
    %479 = vmatprep.subr.mxu0 0.0
    %480 = vmatpush1.msra.mxu0 0.0
    %481 = vmatprep.subr.mxu0 0.0
    %482 = vmatpush1.msra.mxu0 0.0
    %483 = vmatprep.subr.mxu0 0.0
    %484 = vmatpush1.msra.mxu0 0.0
    %485 = vmatprep.subr.mxu0 0.0
    %486 = vmatpush1.msra.mxu0 0.0
    %487 = vmatprep.subr.mxu0 0.0
    %488 = vmatpush1.msra.mxu0 0.0
    %489 = vmatprep.subr.mxu0 0.0
    %490 = vmatpush1.msra.mxu0 %v380
    %491 = vmatprep.subr.mxu0 0.0
    %492 = vmatpush2.msra.mxu0 0.0
    %493 = vmatprep.subr.mxu0 0.0
    %494 = vmatpush2.msra.mxu0 0.0
    %495 = vmatprep.subr.mxu0 0.0
    %496 = vmatpush2.msra.mxu0 0.0
    %497 = vmatprep.subr.mxu0 0.0
    %498 = vmatpush2.msra.mxu0 0.0
    %499 = vmatprep.subr.mxu0 0.0
    %500 = vmatpush2.msra.mxu0 0.0
    %501 = vmatprep.subr.mxu0 0.0
    %502 = vmatpush2.msra.mxu0 0.0
    %503 = vmatprep.subr.mxu0 0.0
    %504 = vmatpush2.msra.mxu0 0.0
    %505 = vmatprep.subr.mxu0 0.0
    %506 = vmatpush2.msra.mxu0 0.0
    %507 = vmatprep.subr.mxu0 0.0
    %508 = vmatpush2.msra.mxu0 0.0
    %509 = vmatprep.subr.mxu0 0.0
    %510 = vmatpush2.msra.mxu0 0.0
    %511 = vmatprep.subr.mxu0 0.0
    %512 = vmatpush2.msra.mxu0 0.0
    %513 = vmatprep.subr.mxu0 0.0
    %514 = vmatpush2.msra.mxu0 0.0
    %515 = vmatprep.subr.mxu0 0.0
    %516 = vmatpush2.msra.mxu0 0.0
    %517 = vmatprep.subr.mxu0 0.0
    %518 = vmatpush2.msra.mxu0 0.0
    %519 = vmatprep.subr.mxu0 0.0
    %520 = vmatpush2.msra.mxu0 0.0
    %521 = vmatprep.subr.mxu0 0.0
    %522 = vmatpush2.msra.mxu0 0.0
    %523 = vmatprep.mubr.f32.mxu0 0.0
    %524 = vmatmul.mubr.f32.gmra.mxu0 %v457
    %v525 = vpop.f32.mrf.mxu0
    %v526 = vadd.f32 0.0, %v525
    %v527 = vpop.f32.mrf.mxu0
    %528 = vdwg.mxu0
    %529 = vrot.lane.b32.xlu0 %v284, 64
    %v530 = vpop.permute.xlu0 %529
    %v532 = vmul.f32 %v526, %v530
    %v533 = vadd.f32 %v455, %v532
    %v534 = vld [vmem:[#allocation6 + $0x3] sm:$0x1]
    %v535 = vlaneseq
    %v536 = vshrl.u32 %v535, 7
    %v537 = vsub.s32 0, %v536
    %v538 = vrot.slane %v534, %v537
    %543 = vrot.lane.b32.xlu0 %v115, 32
    %v544 = vpop.permute.xlu0 %543
    %545 = vrot.lane.b32.xlu0 %v116, 32
    %v546 = vpop.permute.xlu0 %545
    %547 = vrot.lane.b32.xlu0 %v117, 32
    %v548 = vpop.permute.xlu0 %547
    %549 = vrot.lane.b32.xlu0 %v118, 32
    %v550 = vpop.permute.xlu0 %549
    %v556 = vsel %vm124, %v533, 0
    %558 = vmatprep.subr.mxu0 0.0
    %559 = vmatpush1.msra.mxu0 0.0
    %560 = vmatprep.subr.mxu0 0.0
    %561 = vmatpush1.msra.mxu0 0.0
    %562 = vmatprep.subr.mxu0 0.0
    %563 = vmatpush1.msra.mxu0 0.0
    %564 = vmatprep.subr.mxu0 0.0
    %565 = vmatpush1.msra.mxu0 0.0
    %566 = vmatprep.subr.mxu0 0.0
    %567 = vmatpush1.msra.mxu0 0.0
    %568 = vmatprep.subr.mxu0 0.0
    %569 = vmatpush1.msra.mxu0 0.0
    %570 = vmatprep.subr.mxu0 0.0
    %571 = vmatpush1.msra.mxu0 0.0
    %572 = vmatprep.subr.mxu0 0.0
    %573 = vmatpush1.msra.mxu0 0.0
    %574 = vmatprep.subr.mxu0 0.0
    %575 = vmatpush1.msra.mxu0 0.0
    %576 = vmatprep.subr.mxu0 0.0
    %577 = vmatpush1.msra.mxu0 0.0
    %578 = vmatprep.subr.mxu0 0.0
    %579 = vmatpush1.msra.mxu0 0.0
    %580 = vmatprep.subr.mxu0 0.0
    %581 = vmatpush1.msra.mxu0 0.0
    %582 = vmatprep.subr.mxu0 0.0
    %583 = vmatpush1.msra.mxu0 %v550
    %584 = vmatprep.subr.mxu0 0.0
    %585 = vmatpush1.msra.mxu0 %v548
    %586 = vmatprep.subr.mxu0 0.0
    %587 = vmatpush1.msra.mxu0 %v546
    %588 = vmatprep.subr.mxu0 0.0
    %589 = vmatpush1.msra.mxu0 %v544
    %590 = vmatprep.subr.mxu0 0.0
    %591 = vmatpush2.msra.mxu0 0.0
    %592 = vmatprep.subr.mxu0 0.0
    %593 = vmatpush2.msra.mxu0 0.0
    %594 = vmatprep.subr.mxu0 0.0
    %595 = vmatpush2.msra.mxu0 0.0
    %596 = vmatprep.subr.mxu0 0.0
    %597 = vmatpush2.msra.mxu0 0.0
    %598 = vmatprep.subr.mxu0 0.0
    %599 = vmatpush2.msra.mxu0 0.0
    %600 = vmatprep.subr.mxu0 0.0
    %601 = vmatpush2.msra.mxu0 0.0
    %602 = vmatprep.subr.mxu0 0.0
    %603 = vmatpush2.msra.mxu0 0.0
    %604 = vmatprep.subr.mxu0 0.0
    %605 = vmatpush2.msra.mxu0 0.0
    %606 = vmatprep.subr.mxu0 0.0
    %607 = vmatpush2.msra.mxu0 0.0
    %608 = vmatprep.subr.mxu0 0.0
    %609 = vmatpush2.msra.mxu0 0.0
    %610 = vmatprep.subr.mxu0 0.0
    %611 = vmatpush2.msra.mxu0 0.0
    %612 = vmatprep.subr.mxu0 0.0
    %613 = vmatpush2.msra.mxu0 0.0
    %614 = vmatprep.subr.mxu0 0.0
    %615 = vmatpush2.msra.mxu0 0.0
    %616 = vmatprep.subr.mxu0 0.0
    %617 = vmatpush2.msra.mxu0 0.0
    %618 = vmatprep.subr.mxu0 0.0
    %619 = vmatpush2.msra.mxu0 0.0
    %620 = vmatprep.subr.mxu0 0.0
    %621 = vmatpush2.msra.mxu0 0.0
    %622 = vmatprep.mubr.f32.mxu0 0.0
    %623 = vmatmul.mubr.f32.gmra.mxu0 %v556
    %v624 = vpop.f32.mrf.mxu0
    %v625 = vadd.f32 %v538, %v624
    %v626 = vpop.f32.mrf.mxu0
    %627 = vdwg.mxu0
    %v628 = vadd.f32 %v87, %v625
    %v629 = vld [vmem:[#allocation6 + $0x8] sm:$0x1]
    %v630 = vld [vmem:[#allocation6 + $0x9] sm:$0x1]
    %v631 = vsel %vm90, %v628, 0.0
    %632 = vadd.xlane.f32.xlu0 %v631
    %v633 = vpop.xlane.xlu0 %632
    %v634 = vmul.f32 %v633, %v94
    %v635 = vsub.f32 %v628, %v634
    %v636 = vmul.f32 %v635, %v635
    %v637 = vsel %vm90, %v636, 0.0
    %638 = vadd.xlane.f32.xlu0 %v637
    %v639 = vpop.xlane.xlu0 %638
    %v640 = vmul.f32 %v639, %v94
    %v641 = vadd.f32 %v640, 1e-05
    %v642 = vrsqrt.pop %v641
    %v643 = vmul.f32 %v635, %v642
    %v644 = vlaneseq
    %v645 = vshrl.u32 %v644, 7
    %v646 = vsub.s32 0, %v645
    %v647 = vrot.slane %v629, %v646
    %v648 = vmul.f32 %v643, %v647
    %v649 = vlaneseq
    %v650 = vshrl.u32 %v649, 7
    %v651 = vsub.s32 0, %v650
    %v652 = vrot.slane %v630, %v651
    %v653 = vadd.f32 %v648, %v652
    %v654 = vld [vmem:[#allocation3 + $0x20] sm:$0xff]
    %v655 = vld [vmem:[#allocation3 + $0x28] sm:$0xff]
    %v656 = vld [vmem:[#allocation3 + $0x30] sm:$0xff]
    %v657 = vld [vmem:[#allocation3 + $0x38] sm:$0xff]
    %v658 = vld [vmem:[#allocation6 + $0x4] sm:$0x1]
    %v659 = vlaneseq
    %v660 = vshrl.u32 %v659, 7
    %v661 = vsub.s32 0, %v660
    %v662 = vrot.slane %v658, %v661
    %v664 = vsel %vm124, %v653, 0
    %666 = vmatprep.subr.mxu0 0.0
    %667 = vmatpush1.msra.mxu0 0.0
    %668 = vmatprep.subr.mxu0 0.0
    %669 = vmatpush1.msra.mxu0 0.0
    %670 = vmatprep.subr.mxu0 0.0
    %671 = vmatpush1.msra.mxu0 0.0
    %672 = vmatprep.subr.mxu0 0.0
    %673 = vmatpush1.msra.mxu0 0.0
    %674 = vmatprep.subr.mxu0 0.0
    %675 = vmatpush1.msra.mxu0 0.0
    %676 = vmatprep.subr.mxu0 0.0
    %677 = vmatpush1.msra.mxu0 0.0
    %678 = vmatprep.subr.mxu0 0.0
    %679 = vmatpush1.msra.mxu0 0.0
    %680 = vmatprep.subr.mxu0 0.0
    %681 = vmatpush1.msra.mxu0 0.0
    %682 = vmatprep.subr.mxu0 0.0
    %683 = vmatpush1.msra.mxu0 0.0
    %684 = vmatprep.subr.mxu0 0.0
    %685 = vmatpush1.msra.mxu0 0.0
    %686 = vmatprep.subr.mxu0 0.0
    %687 = vmatpush1.msra.mxu0 0.0
    %688 = vmatprep.subr.mxu0 0.0
    %689 = vmatpush1.msra.mxu0 0.0
    %690 = vmatprep.subr.mxu0 0.0
    %691 = vmatpush1.msra.mxu0 %v657
    %692 = vmatprep.subr.mxu0 0.0
    %693 = vmatpush1.msra.mxu0 %v656
    %694 = vmatprep.subr.mxu0 0.0
    %695 = vmatpush1.msra.mxu0 %v655
    %696 = vmatprep.subr.mxu0 0.0
    %697 = vmatpush1.msra.mxu0 %v654
    %698 = vmatprep.subr.mxu0 0.0
    %699 = vmatpush2.msra.mxu0 0.0
    %700 = vmatprep.subr.mxu0 0.0
    %701 = vmatpush2.msra.mxu0 0.0
    %702 = vmatprep.subr.mxu0 0.0
    %703 = vmatpush2.msra.mxu0 0.0
    %704 = vmatprep.subr.mxu0 0.0
    %705 = vmatpush2.msra.mxu0 0.0
    %706 = vmatprep.subr.mxu0 0.0
    %707 = vmatpush2.msra.mxu0 0.0
    %708 = vmatprep.subr.mxu0 0.0
    %709 = vmatpush2.msra.mxu0 0.0
    %710 = vmatprep.subr.mxu0 0.0
    %711 = vmatpush2.msra.mxu0 0.0
    %712 = vmatprep.subr.mxu0 0.0
    %713 = vmatpush2.msra.mxu0 0.0
    %714 = vmatprep.subr.mxu0 0.0
    %715 = vmatpush2.msra.mxu0 0.0
    %716 = vmatprep.subr.mxu0 0.0
    %717 = vmatpush2.msra.mxu0 0.0
    %718 = vmatprep.subr.mxu0 0.0
    %719 = vmatpush2.msra.mxu0 0.0
    %720 = vmatprep.subr.mxu0 0.0
    %721 = vmatpush2.msra.mxu0 0.0
    %722 = vmatprep.subr.mxu0 0.0
    %723 = vmatpush2.msra.mxu0 0.0
    %724 = vmatprep.subr.mxu0 0.0
    %725 = vmatpush2.msra.mxu0 0.0
    %726 = vmatprep.subr.mxu0 0.0
    %727 = vmatpush2.msra.mxu0 0.0
    %728 = vmatprep.subr.mxu0 0.0
    %729 = vmatpush2.msra.mxu0 0.0
    %730 = vmatprep.mubr.f32.mxu0 0.0
    %731 = vmatmul.mubr.f32.gmra.mxu0 %v664
    %v732 = vpop.f32.mrf.mxu0
    %v733 = vadd.f32 %v662, %v732
    %v734 = vpop.f32.mrf.mxu0
    %735 = vdwg.mxu0
    %v736 = vmax.f32 %v733, 0.0
    %v737 = vld [vmem:[#allocation3 + $0x40] sm:$0xff]
    %v738 = vld [vmem:[#allocation3 + $0x48] sm:$0xff]
    %v739 = vld [vmem:[#allocation3 + $0x50] sm:$0xff]
    %v740 = vld [vmem:[#allocation3 + $0x58] sm:$0xff]
    %v741 = vld [vmem:[#allocation3 + $0x60] sm:$0xff]
    %v742 = vld [vmem:[#allocation3 + $0x68] sm:$0xff]
    %v743 = vld [vmem:[#allocation3 + $0x70] sm:$0xff]
    %v744 = vld [vmem:[#allocation3 + $0x78] sm:$0xff]
    %v745 = vld [vmem:[#allocation6 + $0x5] sm:$0x1]
    %v746 = vlaneseq
    %v747 = vshrl.u32 %v746, 7
    %v748 = vsub.s32 0, %v747
    %v749 = vrot.slane %v745, %v748
    %vm750 = vcmask 523264
    %v752 = vsel %vm750, %v736, 0
    %754 = vmatprep.subr.mxu0 0.0
    %755 = vmatpush1.msra.mxu0 0.0
    %756 = vmatprep.subr.mxu0 0.0
    %757 = vmatpush1.msra.mxu0 0.0
    %758 = vmatprep.subr.mxu0 0.0
    %759 = vmatpush1.msra.mxu0 0.0
    %760 = vmatprep.subr.mxu0 0.0
    %761 = vmatpush1.msra.mxu0 0.0
    %762 = vmatprep.subr.mxu0 0.0
    %763 = vmatpush1.msra.mxu0 0.0
    %764 = vmatprep.subr.mxu0 0.0
    %765 = vmatpush1.msra.mxu0 0.0
    %766 = vmatprep.subr.mxu0 0.0
    %767 = vmatpush1.msra.mxu0 0.0
    %768 = vmatprep.subr.mxu0 0.0
    %769 = vmatpush1.msra.mxu0 0.0
    %770 = vmatprep.subr.mxu0 0.0
    %771 = vmatpush1.msra.mxu0 %v744
    %772 = vmatprep.subr.mxu0 0.0
    %773 = vmatpush1.msra.mxu0 %v743
    %774 = vmatprep.subr.mxu0 0.0
    %775 = vmatpush1.msra.mxu0 %v742
    %776 = vmatprep.subr.mxu0 0.0
    %777 = vmatpush1.msra.mxu0 %v741
    %778 = vmatprep.subr.mxu0 0.0
    %779 = vmatpush1.msra.mxu0 %v740
    %780 = vmatprep.subr.mxu0 0.0
    %781 = vmatpush1.msra.mxu0 %v739
    %782 = vmatprep.subr.mxu0 0.0
    %783 = vmatpush1.msra.mxu0 %v738
    %784 = vmatprep.subr.mxu0 0.0
    %785 = vmatpush1.msra.mxu0 %v737
    %786 = vmatprep.subr.mxu0 0.0
    %787 = vmatpush2.msra.mxu0 0.0
    %788 = vmatprep.subr.mxu0 0.0
    %789 = vmatpush2.msra.mxu0 0.0
    %790 = vmatprep.subr.mxu0 0.0
    %791 = vmatpush2.msra.mxu0 0.0
    %792 = vmatprep.subr.mxu0 0.0
    %793 = vmatpush2.msra.mxu0 0.0
    %794 = vmatprep.subr.mxu0 0.0
    %795 = vmatpush2.msra.mxu0 0.0
    %796 = vmatprep.subr.mxu0 0.0
    %797 = vmatpush2.msra.mxu0 0.0
    %798 = vmatprep.subr.mxu0 0.0
    %799 = vmatpush2.msra.mxu0 0.0
    %800 = vmatprep.subr.mxu0 0.0
    %801 = vmatpush2.msra.mxu0 0.0
    %802 = vmatprep.subr.mxu0 0.0
    %803 = vmatpush2.msra.mxu0 0.0
    %804 = vmatprep.subr.mxu0 0.0
    %805 = vmatpush2.msra.mxu0 0.0
    %806 = vmatprep.subr.mxu0 0.0
    %807 = vmatpush2.msra.mxu0 0.0
    %808 = vmatprep.subr.mxu0 0.0
    %809 = vmatpush2.msra.mxu0 0.0
    %810 = vmatprep.subr.mxu0 0.0
    %811 = vmatpush2.msra.mxu0 0.0
    %812 = vmatprep.subr.mxu0 0.0
    %813 = vmatpush2.msra.mxu0 0.0
    %814 = vmatprep.subr.mxu0 0.0
    %815 = vmatpush2.msra.mxu0 0.0
    %816 = vmatprep.subr.mxu0 0.0
    %817 = vmatpush2.msra.mxu0 0.0
    %818 = vmatprep.mubr.f32.mxu0 0.0
    %819 = vmatmul.mubr.f32.gmra.mxu0 %v752
    %v820 = vpop.f32.mrf.mxu0
    %v821 = vadd.f32 %v749, %v820
    %v822 = vpop.f32.mrf.mxu0
    %823 = vdwg.mxu0
    %v824 = vadd.f32 %v628, %v821
    %v825 = vld [vmem:[#allocation6 + $0xe] sm:$0x1]
    %v826 = vld [vmem:[#allocation6 + $0xf] sm:$0x1]
    %v827 = vsel %vm90, %v824, 0.0
    %828 = vadd.xlane.f32.xlu0 %v827
    %v829 = vpop.xlane.xlu0 %828
    %v830 = vmul.f32 %v829, %v94
    %v831 = vsub.f32 %v824, %v830
    %v832 = vmul.f32 %v831, %v831
    %v833 = vsel %vm90, %v832, 0.0
    %834 = vadd.xlane.f32.xlu0 %v833
    %v835 = vpop.xlane.xlu0 %834
    %v836 = vmul.f32 %v835, %v94
    %v837 = vadd.f32 %v836, 1e-05
    %v838 = vrsqrt.pop %v837
    %v839 = vmul.f32 %v831, %v838
    %v840 = vlaneseq
    %v841 = vshrl.u32 %v840, 7
    %v842 = vsub.s32 0, %v841
    %v843 = vrot.slane %v825, %v842
    %v844 = vmul.f32 %v839, %v843
    %v845 = vlaneseq
    %v846 = vshrl.u32 %v845, 7
    %v847 = vsub.s32 0, %v846
    %v848 = vrot.slane %v826, %v847
    %v849 = vadd.f32 %v844, %v848
    %v850 = vld [vmem:[#allocation3 + $0x80] sm:$0xff]
    %v851 = vld [vmem:[#allocation3 + $0x88] sm:$0xff]
    %v852 = vld [vmem:[#allocation3 + $0x90] sm:$0xff]
    %v853 = vld [vmem:[#allocation3 + $0x98] sm:$0xff]
    %v854 = vld [vmem:[#allocation6 + $0xa] sm:$0x1]
    %v855 = vlaneseq
    %v856 = vshrl.u32 %v855, 7
    %v857 = vsub.s32 0, %v856
    %v858 = vrot.slane %v854, %v857
    %v860 = vsel %vm124, %v849, 0
    %862 = vmatprep.subr.mxu0 0.0
    %863 = vmatpush1.msra.mxu0 0.0
    %864 = vmatprep.subr.mxu0 0.0
    %865 = vmatpush1.msra.mxu0 0.0
    %866 = vmatprep.subr.mxu0 0.0
    %867 = vmatpush1.msra.mxu0 0.0
    %868 = vmatprep.subr.mxu0 0.0
    %869 = vmatpush1.msra.mxu0 0.0
    %870 = vmatprep.subr.mxu0 0.0
    %871 = vmatpush1.msra.mxu0 0.0
    %872 = vmatprep.subr.mxu0 0.0
    %873 = vmatpush1.msra.mxu0 0.0
    %874 = vmatprep.subr.mxu0 0.0
    %875 = vmatpush1.msra.mxu0 0.0
    %876 = vmatprep.subr.mxu0 0.0
    %877 = vmatpush1.msra.mxu0 0.0
    %878 = vmatprep.subr.mxu0 0.0
    %879 = vmatpush1.msra.mxu0 0.0
    %880 = vmatprep.subr.mxu0 0.0
    %881 = vmatpush1.msra.mxu0 0.0
    %882 = vmatprep.subr.mxu0 0.0
    %883 = vmatpush1.msra.mxu0 0.0
    %884 = vmatprep.subr.mxu0 0.0
    %885 = vmatpush1.msra.mxu0 0.0
    %886 = vmatprep.subr.mxu0 0.0
    %887 = vmatpush1.msra.mxu0 %v853
    %888 = vmatprep.subr.mxu0 0.0
    %889 = vmatpush1.msra.mxu0 %v852
    %890 = vmatprep.subr.mxu0 0.0
    %891 = vmatpush1.msra.mxu0 %v851
    %892 = vmatprep.subr.mxu0 0.0
    %893 = vmatpush1.msra.mxu0 %v850
    %894 = vmatprep.subr.mxu0 0.0
    %895 = vmatpush2.msra.mxu0 0.0
    %896 = vmatprep.subr.mxu0 0.0
    %897 = vmatpush2.msra.mxu0 0.0
    %898 = vmatprep.subr.mxu0 0.0
    %899 = vmatpush2.msra.mxu0 0.0
    %900 = vmatprep.subr.mxu0 0.0
    %901 = vmatpush2.msra.mxu0 0.0
    %902 = vmatprep.subr.mxu0 0.0
    %903 = vmatpush2.msra.mxu0 0.0
    %904 = vmatprep.subr.mxu0 0.0
    %905 = vmatpush2.msra.mxu0 0.0
    %906 = vmatprep.subr.mxu0 0.0
    %907 = vmatpush2.msra.mxu0 0.0
    %908 = vmatprep.subr.mxu0 0.0
    %909 = vmatpush2.msra.mxu0 0.0
    %910 = vmatprep.subr.mxu0 0.0
    %911 = vmatpush2.msra.mxu0 0.0
    %912 = vmatprep.subr.mxu0 0.0
    %913 = vmatpush2.msra.mxu0 0.0
    %914 = vmatprep.subr.mxu0 0.0
    %915 = vmatpush2.msra.mxu0 0.0
    %916 = vmatprep.subr.mxu0 0.0
    %917 = vmatpush2.msra.mxu0 0.0
    %918 = vmatprep.subr.mxu0 0.0
    %919 = vmatpush2.msra.mxu0 0.0
    %920 = vmatprep.subr.mxu0 0.0
    %921 = vmatpush2.msra.mxu0 0.0
    %922 = vmatprep.subr.mxu0 0.0
    %923 = vmatpush2.msra.mxu0 0.0
    %924 = vmatprep.subr.mxu0 0.0
    %925 = vmatpush2.msra.mxu0 0.0
    %926 = vmatprep.mubr.f32.mxu0 0.0
    %927 = vmatmul.mubr.f32.gmra.mxu0 %v860
    %v928 = vpop.f32.mrf.mxu0
    %v929 = vadd.f32 %v858, %v928
    %v930 = vpop.f32.mrf.mxu0
    %931 = vdwg.mxu0
    %v932 = vmul.f32 %v929, 0.35355338
    %v933 = vlaneseq
    %v934 = vshrl.u32 %v933, 7
    %v935 = vsub.s32 0, %v934
    %v936 = vrot.slane %v929, %v935
    %938 = vrot.lane.b32.xlu0 %v936, 96
    %v939 = vpop.permute.xlu0 %938
    %v941 = vmul.f32 %v932, %v939
    %v943 = vsel %vm124, %v941, 0
    %945 = vmatprep.subr.mxu0 0.0
    %946 = vmatpush1.msra.mxu0 0.0
    %947 = vmatprep.subr.mxu0 0.0
    %948 = vmatpush1.msra.mxu0 0.0
    %949 = vmatprep.subr.mxu0 0.0
    %950 = vmatpush1.msra.mxu0 0.0
    %951 = vmatprep.subr.mxu0 0.0
    %952 = vmatpush1.msra.mxu0 0.0
    %953 = vmatprep.subr.mxu0 0.0
    %954 = vmatpush1.msra.mxu0 0.0
    %955 = vmatprep.subr.mxu0 0.0
    %956 = vmatpush1.msra.mxu0 0.0
    %957 = vmatprep.subr.mxu0 0.0
    %958 = vmatpush1.msra.mxu0 0.0
    %959 = vmatprep.subr.mxu0 0.0
    %960 = vmatpush1.msra.mxu0 0.0
    %961 = vmatprep.subr.mxu0 0.0
    %962 = vmatpush1.msra.mxu0 0.0
    %963 = vmatprep.subr.mxu0 0.0
    %964 = vmatpush1.msra.mxu0 0.0
    %965 = vmatprep.subr.mxu0 0.0
    %966 = vmatpush1.msra.mxu0 0.0
    %967 = vmatprep.subr.mxu0 0.0
    %968 = vmatpush1.msra.mxu0 0.0
    %969 = vmatprep.subr.mxu0 0.0
    %970 = vmatpush1.msra.mxu0 %v73
    %971 = vmatprep.subr.mxu0 0.0
    %972 = vmatpush1.msra.mxu0 %v72
    %973 = vmatprep.subr.mxu0 0.0
    %974 = vmatpush1.msra.mxu0 %v71
    %975 = vmatprep.subr.mxu0 0.0
    %976 = vmatpush1.msra.mxu0 %v70
    %977 = vmatprep.subr.mxu0 0.0
    %978 = vmatpush2.msra.mxu0 0.0
    %979 = vmatprep.subr.mxu0 0.0
    %980 = vmatpush2.msra.mxu0 0.0
    %981 = vmatprep.subr.mxu0 0.0
    %982 = vmatpush2.msra.mxu0 0.0
    %983 = vmatprep.subr.mxu0 0.0
    %984 = vmatpush2.msra.mxu0 0.0
    %985 = vmatprep.subr.mxu0 0.0
    %986 = vmatpush2.msra.mxu0 0.0
    %987 = vmatprep.subr.mxu0 0.0
    %988 = vmatpush2.msra.mxu0 0.0
    %989 = vmatprep.subr.mxu0 0.0
    %990 = vmatpush2.msra.mxu0 0.0
    %991 = vmatprep.subr.mxu0 0.0
    %992 = vmatpush2.msra.mxu0 0.0
    %993 = vmatprep.subr.mxu0 0.0
    %994 = vmatpush2.msra.mxu0 0.0
    %995 = vmatprep.subr.mxu0 0.0
    %996 = vmatpush2.msra.mxu0 0.0
    %997 = vmatprep.subr.mxu0 0.0
    %998 = vmatpush2.msra.mxu0 0.0
    %999 = vmatprep.subr.mxu0 0.0
    %1000 = vmatpush2.msra.mxu0 0.0
    %1001 = vmatprep.subr.mxu0 0.0
    %1002 = vmatpush2.msra.mxu0 0.0
    %1003 = vmatprep.subr.mxu0 0.0
    %1004 = vmatpush2.msra.mxu0 0.0
    %1005 = vmatprep.subr.mxu0 0.0
    %1006 = vmatpush2.msra.mxu0 0.0
    %1007 = vmatprep.subr.mxu0 0.0
    %1008 = vmatpush2.msra.mxu0 0.0
    %1009 = vmatprep.mubr.f32.mxu0 0.0
    %1010 = vmatmul.mubr.f32.gmra.mxu0 %v943
    %v1011 = vpop.f32.mrf.mxu0
    %v1012 = vadd.f32 0.0, %v1011
    %v1013 = vpop.f32.mrf.mxu0
    %1014 = vdwg.mxu0
    %v1015 = vlaneseq
    %v1016 = vshrl.u32 %v1015, 7
    %v1017 = vsub.s32 1, %v1016
    %v1018 = vrot.slane %v929, %v1017
    %1020 = vrot.lane.b32.xlu0 %v1018, 96
    %v1021 = vpop.permute.xlu0 %1020
    %v1023 = vmul.f32 %v932, %v1021
    %v1025 = vsel %vm124, %v1023, 0
    %1027 = vmatprep.subr.mxu0 0.0
    %1028 = vmatpush1.msra.mxu0 0.0
    %1029 = vmatprep.subr.mxu0 0.0
    %1030 = vmatpush1.msra.mxu0 0.0
    %1031 = vmatprep.subr.mxu0 0.0
    %1032 = vmatpush1.msra.mxu0 0.0
    %1033 = vmatprep.subr.mxu0 0.0
    %1034 = vmatpush1.msra.mxu0 0.0
    %1035 = vmatprep.subr.mxu0 0.0
    %1036 = vmatpush1.msra.mxu0 0.0
    %1037 = vmatprep.subr.mxu0 0.0
    %1038 = vmatpush1.msra.mxu0 0.0
    %1039 = vmatprep.subr.mxu0 0.0
    %1040 = vmatpush1.msra.mxu0 0.0
    %1041 = vmatprep.subr.mxu0 0.0
    %1042 = vmatpush1.msra.mxu0 0.0
    %1043 = vmatprep.subr.mxu0 0.0
    %1044 = vmatpush1.msra.mxu0 0.0
    %1045 = vmatprep.subr.mxu0 0.0
    %1046 = vmatpush1.msra.mxu0 0.0
    %1047 = vmatprep.subr.mxu0 0.0
    %1048 = vmatpush1.msra.mxu0 0.0
    %1049 = vmatprep.subr.mxu0 0.0
    %1050 = vmatpush1.msra.mxu0 0.0
    %1051 = vmatprep.subr.mxu0 0.0
    %1052 = vmatpush1.msra.mxu0 %v73
    %1053 = vmatprep.subr.mxu0 0.0
    %1054 = vmatpush1.msra.mxu0 %v72
    %1055 = vmatprep.subr.mxu0 0.0
    %1056 = vmatpush1.msra.mxu0 %v71
    %1057 = vmatprep.subr.mxu0 0.0
    %1058 = vmatpush1.msra.mxu0 %v70
    %1059 = vmatprep.subr.mxu0 0.0
    %1060 = vmatpush2.msra.mxu0 0.0
    %1061 = vmatprep.subr.mxu0 0.0
    %1062 = vmatpush2.msra.mxu0 0.0
    %1063 = vmatprep.subr.mxu0 0.0
    %1064 = vmatpush2.msra.mxu0 0.0
    %1065 = vmatprep.subr.mxu0 0.0
    %1066 = vmatpush2.msra.mxu0 0.0
    %1067 = vmatprep.subr.mxu0 0.0
    %1068 = vmatpush2.msra.mxu0 0.0
    %1069 = vmatprep.subr.mxu0 0.0
    %1070 = vmatpush2.msra.mxu0 0.0
    %1071 = vmatprep.subr.mxu0 0.0
    %1072 = vmatpush2.msra.mxu0 0.0
    %1073 = vmatprep.subr.mxu0 0.0
    %1074 = vmatpush2.msra.mxu0 0.0
    %1075 = vmatprep.subr.mxu0 0.0
    %1076 = vmatpush2.msra.mxu0 0.0
    %1077 = vmatprep.subr.mxu0 0.0
    %1078 = vmatpush2.msra.mxu0 0.0
    %1079 = vmatprep.subr.mxu0 0.0
    %1080 = vmatpush2.msra.mxu0 0.0
    %1081 = vmatprep.subr.mxu0 0.0
    %1082 = vmatpush2.msra.mxu0 0.0
    %1083 = vmatprep.subr.mxu0 0.0
    %1084 = vmatpush2.msra.mxu0 0.0
    %1085 = vmatprep.subr.mxu0 0.0
    %1086 = vmatpush2.msra.mxu0 0.0
    %1087 = vmatprep.subr.mxu0 0.0
    %1088 = vmatpush2.msra.mxu0 0.0
    %1089 = vmatprep.subr.mxu0 0.0
    %1090 = vmatpush2.msra.mxu0 0.0
    %1091 = vmatprep.mubr.f32.mxu0 0.0
    %1092 = vmatmul.mubr.f32.gmra.mxu0 %v1025
    %v1093 = vpop.f32.mrf.mxu0
    %v1094 = vadd.f32 0.0, %v1093
    %v1095 = vpop.f32.mrf.mxu0
    %1096 = vdwg.mxu0
    %v1097 = vmax.f32 %v1012, %v1094
    %v1098 = vsub.f32 %v1012, %v1097
    %v1099 = vmul.f32 %v1098, 1.442695
    %v1100 = vpow.pop %v1099
    %v1101 = vsub.f32 %v1094, %v1097
    %v1102 = vmul.f32 %v1101, 1.442695
    %v1103 = vpow.pop %v1102
    %v1104 = vadd.f32 %v1100, %v1103
    %v1105 = vrcp.pop %v1104
    %v1106 = vmul.f32 %v1100, %v1105
    %v1107 = vmul.f32 %v1103, %v1105
    %v1109 = vsel %vm374, %v1106, 0
    %1111 = vmatprep.subr.mxu0 0.0
    %1112 = vmatpush1.msra.mxu0 0.0
    %1113 = vmatprep.subr.mxu0 0.0
    %1114 = vmatpush1.msra.mxu0 0.0
    %1115 = vmatprep.subr.mxu0 0.0
    %1116 = vmatpush1.msra.mxu0 0.0
    %1117 = vmatprep.subr.mxu0 0.0
    %1118 = vmatpush1.msra.mxu0 0.0
    %1119 = vmatprep.subr.mxu0 0.0
    %1120 = vmatpush1.msra.mxu0 0.0
    %1121 = vmatprep.subr.mxu0 0.0
    %1122 = vmatpush1.msra.mxu0 0.0
    %1123 = vmatprep.subr.mxu0 0.0
    %1124 = vmatpush1.msra.mxu0 0.0
    %1125 = vmatprep.subr.mxu0 0.0
    %1126 = vmatpush1.msra.mxu0 0.0
    %1127 = vmatprep.subr.mxu0 0.0
    %1128 = vmatpush1.msra.mxu0 0.0
    %1129 = vmatprep.subr.mxu0 0.0
    %1130 = vmatpush1.msra.mxu0 0.0
    %1131 = vmatprep.subr.mxu0 0.0
    %1132 = vmatpush1.msra.mxu0 0.0
    %1133 = vmatprep.subr.mxu0 0.0
    %1134 = vmatpush1.msra.mxu0 0.0
    %1135 = vmatprep.subr.mxu0 0.0
    %1136 = vmatpush1.msra.mxu0 0.0
    %1137 = vmatprep.subr.mxu0 0.0
    %1138 = vmatpush1.msra.mxu0 0.0
    %1139 = vmatprep.subr.mxu0 0.0
    %1140 = vmatpush1.msra.mxu0 0.0
    %1141 = vmatprep.subr.mxu0 0.0
    %1142 = vmatpush1.msra.mxu0 %v380
    %1143 = vmatprep.subr.mxu0 0.0
    %1144 = vmatpush2.msra.mxu0 0.0
    %1145 = vmatprep.subr.mxu0 0.0
    %1146 = vmatpush2.msra.mxu0 0.0
    %1147 = vmatprep.subr.mxu0 0.0
    %1148 = vmatpush2.msra.mxu0 0.0
    %1149 = vmatprep.subr.mxu0 0.0
    %1150 = vmatpush2.msra.mxu0 0.0
    %1151 = vmatprep.subr.mxu0 0.0
    %1152 = vmatpush2.msra.mxu0 0.0
    %1153 = vmatprep.subr.mxu0 0.0
    %1154 = vmatpush2.msra.mxu0 0.0
    %1155 = vmatprep.subr.mxu0 0.0
    %1156 = vmatpush2.msra.mxu0 0.0
    %1157 = vmatprep.subr.mxu0 0.0
    %1158 = vmatpush2.msra.mxu0 0.0
    %1159 = vmatprep.subr.mxu0 0.0
    %1160 = vmatpush2.msra.mxu0 0.0
    %1161 = vmatprep.subr.mxu0 0.0
    %1162 = vmatpush2.msra.mxu0 0.0
    %1163 = vmatprep.subr.mxu0 0.0
    %1164 = vmatpush2.msra.mxu0 0.0
    %1165 = vmatprep.subr.mxu0 0.0
    %1166 = vmatpush2.msra.mxu0 0.0
    %1167 = vmatprep.subr.mxu0 0.0
    %1168 = vmatpush2.msra.mxu0 0.0
    %1169 = vmatprep.subr.mxu0 0.0
    %1170 = vmatpush2.msra.mxu0 0.0
    %1171 = vmatprep.subr.mxu0 0.0
    %1172 = vmatpush2.msra.mxu0 0.0
    %1173 = vmatprep.subr.mxu0 0.0
    %1174 = vmatpush2.msra.mxu0 0.0
    %1175 = vmatprep.mubr.f32.mxu0 0.0
    %1176 = vmatmul.mubr.f32.gmra.mxu0 %v1109
    %v1177 = vpop.f32.mrf.mxu0
    %v1178 = vadd.f32 0.0, %v1177
    %v1179 = vpop.f32.mrf.mxu0
    %1180 = vdwg.mxu0
    %1181 = vrot.lane.b32.xlu0 %v936, 64
    %v1182 = vpop.permute.xlu0 %1181
    %v1184 = vmul.f32 %v1178, %v1182
    %v1186 = vsel %vm374, %v1107, 0
    %1188 = vmatprep.subr.mxu0 0.0
    %1189 = vmatpush1.msra.mxu0 0.0
    %1190 = vmatprep.subr.mxu0 0.0
    %1191 = vmatpush1.msra.mxu0 0.0
    %1192 = vmatprep.subr.mxu0 0.0
    %1193 = vmatpush1.msra.mxu0 0.0
    %1194 = vmatprep.subr.mxu0 0.0
    %1195 = vmatpush1.msra.mxu0 0.0
    %1196 = vmatprep.subr.mxu0 0.0
    %1197 = vmatpush1.msra.mxu0 0.0
    %1198 = vmatprep.subr.mxu0 0.0
    %1199 = vmatpush1.msra.mxu0 0.0
    %1200 = vmatprep.subr.mxu0 0.0
    %1201 = vmatpush1.msra.mxu0 0.0
    %1202 = vmatprep.subr.mxu0 0.0
    %1203 = vmatpush1.msra.mxu0 0.0
    %1204 = vmatprep.subr.mxu0 0.0
    %1205 = vmatpush1.msra.mxu0 0.0
    %1206 = vmatprep.subr.mxu0 0.0
    %1207 = vmatpush1.msra.mxu0 0.0
    %1208 = vmatprep.subr.mxu0 0.0
    %1209 = vmatpush1.msra.mxu0 0.0
    %1210 = vmatprep.subr.mxu0 0.0
    %1211 = vmatpush1.msra.mxu0 0.0
    %1212 = vmatprep.subr.mxu0 0.0
    %1213 = vmatpush1.msra.mxu0 0.0
    %1214 = vmatprep.subr.mxu0 0.0
    %1215 = vmatpush1.msra.mxu0 0.0
    %1216 = vmatprep.subr.mxu0 0.0
    %1217 = vmatpush1.msra.mxu0 0.0
    %1218 = vmatprep.subr.mxu0 0.0
    %1219 = vmatpush1.msra.mxu0 %v380
    %1220 = vmatprep.subr.mxu0 0.0
    %1221 = vmatpush2.msra.mxu0 0.0
    %1222 = vmatprep.subr.mxu0 0.0
    %1223 = vmatpush2.msra.mxu0 0.0
    %1224 = vmatprep.subr.mxu0 0.0
    %1225 = vmatpush2.msra.mxu0 0.0
    %1226 = vmatprep.subr.mxu0 0.0
    %1227 = vmatpush2.msra.mxu0 0.0
    %1228 = vmatprep.subr.mxu0 0.0
    %1229 = vmatpush2.msra.mxu0 0.0
    %1230 = vmatprep.subr.mxu0 0.0
    %1231 = vmatpush2.msra.mxu0 0.0
    %1232 = vmatprep.subr.mxu0 0.0
    %1233 = vmatpush2.msra.mxu0 0.0
    %1234 = vmatprep.subr.mxu0 0.0
    %1235 = vmatpush2.msra.mxu0 0.0
    %1236 = vmatprep.subr.mxu0 0.0
    %1237 = vmatpush2.msra.mxu0 0.0
    %1238 = vmatprep.subr.mxu0 0.0
    %1239 = vmatpush2.msra.mxu0 0.0
    %1240 = vmatprep.subr.mxu0 0.0
    %1241 = vmatpush2.msra.mxu0 0.0
    %1242 = vmatprep.subr.mxu0 0.0
    %1243 = vmatpush2.msra.mxu0 0.0
    %1244 = vmatprep.subr.mxu0 0.0
    %1245 = vmatpush2.msra.mxu0 0.0
    %1246 = vmatprep.subr.mxu0 0.0
    %1247 = vmatpush2.msra.mxu0 0.0
    %1248 = vmatprep.subr.mxu0 0.0
    %1249 = vmatpush2.msra.mxu0 0.0
    %1250 = vmatprep.subr.mxu0 0.0
    %1251 = vmatpush2.msra.mxu0 0.0
    %1252 = vmatprep.mubr.f32.mxu0 0.0
    %1253 = vmatmul.mubr.f32.gmra.mxu0 %v1186
    %v1254 = vpop.f32.mrf.mxu0
    %v1255 = vadd.f32 0.0, %v1254
    %v1256 = vpop.f32.mrf.mxu0
    %1257 = vdwg.mxu0
    %1258 = vrot.lane.b32.xlu0 %v1018, 64
    %v1259 = vpop.permute.xlu0 %1258
    %v1261 = vmul.f32 %v1255, %v1259
    %v1262 = vadd.f32 %v1184, %v1261
    %v1263 = vld [vmem:[#allocation6 + $0xb] sm:$0x1]
    %v1264 = vlaneseq
    %v1265 = vshrl.u32 %v1264, 7
    %v1266 = vsub.s32 0, %v1265
    %v1267 = vrot.slane %v1263, %v1266
    %1272 = vrot.lane.b32.xlu0 %v850, 32
    %v1273 = vpop.permute.xlu0 %1272
    %1274 = vrot.lane.b32.xlu0 %v851, 32
    %v1275 = vpop.permute.xlu0 %1274
    %1276 = vrot.lane.b32.xlu0 %v852, 32
    %v1277 = vpop.permute.xlu0 %1276
    %1278 = vrot.lane.b32.xlu0 %v853, 32
    %v1279 = vpop.permute.xlu0 %1278
    %v1285 = vsel %vm124, %v1262, 0
    %1287 = vmatprep.subr.mxu0 0.0
    %1288 = vmatpush1.msra.mxu0 0.0
    %1289 = vmatprep.subr.mxu0 0.0
    %1290 = vmatpush1.msra.mxu0 0.0
    %1291 = vmatprep.subr.mxu0 0.0
    %1292 = vmatpush1.msra.mxu0 0.0
    %1293 = vmatprep.subr.mxu0 0.0
    %1294 = vmatpush1.msra.mxu0 0.0
    %1295 = vmatprep.subr.mxu0 0.0
    %1296 = vmatpush1.msra.mxu0 0.0
    %1297 = vmatprep.subr.mxu0 0.0
    %1298 = vmatpush1.msra.mxu0 0.0
    %1299 = vmatprep.subr.mxu0 0.0
    %1300 = vmatpush1.msra.mxu0 0.0
    %1301 = vmatprep.subr.mxu0 0.0
    %1302 = vmatpush1.msra.mxu0 0.0
    %1303 = vmatprep.subr.mxu0 0.0
    %1304 = vmatpush1.msra.mxu0 0.0
    %1305 = vmatprep.subr.mxu0 0.0
    %1306 = vmatpush1.msra.mxu0 0.0
    %1307 = vmatprep.subr.mxu0 0.0
    %1308 = vmatpush1.msra.mxu0 0.0
    %1309 = vmatprep.subr.mxu0 0.0
    %1310 = vmatpush1.msra.mxu0 0.0
    %1311 = vmatprep.subr.mxu0 0.0
    %1312 = vmatpush1.msra.mxu0 %v1279
    %1313 = vmatprep.subr.mxu0 0.0
    %1314 = vmatpush1.msra.mxu0 %v1277
    %1315 = vmatprep.subr.mxu0 0.0
    %1316 = vmatpush1.msra.mxu0 %v1275
    %1317 = vmatprep.subr.mxu0 0.0
    %1318 = vmatpush1.msra.mxu0 %v1273
    %1319 = vmatprep.subr.mxu0 0.0
    %1320 = vmatpush2.msra.mxu0 0.0
    %1321 = vmatprep.subr.mxu0 0.0
    %1322 = vmatpush2.msra.mxu0 0.0
    %1323 = vmatprep.subr.mxu0 0.0
    %1324 = vmatpush2.msra.mxu0 0.0
    %1325 = vmatprep.subr.mxu0 0.0
    %1326 = vmatpush2.msra.mxu0 0.0
    %1327 = vmatprep.subr.mxu0 0.0
    %1328 = vmatpush2.msra.mxu0 0.0
    %1329 = vmatprep.subr.mxu0 0.0
    %1330 = vmatpush2.msra.mxu0 0.0
    %1331 = vmatprep.subr.mxu0 0.0
    %1332 = vmatpush2.msra.mxu0 0.0
    %1333 = vmatprep.subr.mxu0 0.0
    %1334 = vmatpush2.msra.mxu0 0.0
    %1335 = vmatprep.subr.mxu0 0.0
    %1336 = vmatpush2.msra.mxu0 0.0
    %1337 = vmatprep.subr.mxu0 0.0
    %1338 = vmatpush2.msra.mxu0 0.0
    %1339 = vmatprep.subr.mxu0 0.0
    %1340 = vmatpush2.msra.mxu0 0.0
    %1341 = vmatprep.subr.mxu0 0.0
    %1342 = vmatpush2.msra.mxu0 0.0
    %1343 = vmatprep.subr.mxu0 0.0
    %1344 = vmatpush2.msra.mxu0 0.0
    %1345 = vmatprep.subr.mxu0 0.0
    %1346 = vmatpush2.msra.mxu0 0.0
    %1347 = vmatprep.subr.mxu0 0.0
    %1348 = vmatpush2.msra.mxu0 0.0
    %1349 = vmatprep.subr.mxu0 0.0
    %1350 = vmatpush2.msra.mxu0 0.0
    %1351 = vmatprep.mubr.f32.mxu0 0.0
    %1352 = vmatmul.mubr.f32.gmra.mxu0 %v1285
    %v1353 = vpop.f32.mrf.mxu0
    %v1354 = vadd.f32 %v1267, %v1353
    %v1355 = vpop.f32.mrf.mxu0
    %1356 = vdwg.mxu0
    %v1357 = vadd.f32 %v824, %v1354
    %v1358 = vld [vmem:[#allocation6 + $0x10] sm:$0x1]
    %v1359 = vld [vmem:[#allocation6 + $0x11] sm:$0x1]
    %v1360 = vsel %vm90, %v1357, 0.0
    %1361 = vadd.xlane.f32.xlu0 %v1360
    %v1362 = vpop.xlane.xlu0 %1361
    %v1363 = vmul.f32 %v1362, %v94
    %v1364 = vsub.f32 %v1357, %v1363
    %v1365 = vmul.f32 %v1364, %v1364
    %v1366 = vsel %vm90, %v1365, 0.0
    %1367 = vadd.xlane.f32.xlu0 %v1366
    %v1368 = vpop.xlane.xlu0 %1367
    %v1369 = vmul.f32 %v1368, %v94
    %v1370 = vadd.f32 %v1369, 1e-05
    %v1371 = vrsqrt.pop %v1370
    %v1372 = vmul.f32 %v1364, %v1371
    %v1373 = vlaneseq
    %v1374 = vshrl.u32 %v1373, 7
    %v1375 = vsub.s32 0, %v1374
    %v1376 = vrot.slane %v1358, %v1375
    %v1377 = vmul.f32 %v1372, %v1376
    %v1378 = vlaneseq
    %v1379 = vshrl.u32 %v1378, 7
    %v1380 = vsub.s32 0, %v1379
    %v1381 = vrot.slane %v1359, %v1380
    %v1382 = vadd.f32 %v1377, %v1381
    %v1383 = vld [vmem:[#allocation3 + $0xa0] sm:$0xff]
    %v1384 = vld [vmem:[#allocation3 + $0xa8] sm:$0xff]
    %v1385 = vld [vmem:[#allocation3 + $0xb0] sm:$0xff]
    %v1386 = vld [vmem:[#allocation3 + $0xb8] sm:$0xff]
    %v1387 = vld [vmem:[#allocation6 + $0xc] sm:$0x1]
    %v1388 = vlaneseq
    %v1389 = vshrl.u32 %v1388, 7
    %v1390 = vsub.s32 0, %v1389
    %v1391 = vrot.slane %v1387, %v1390
    %v1393 = vsel %vm124, %v1382, 0
    %1395 = vmatprep.subr.mxu0 0.0
    %1396 = vmatpush1.msra.mxu0 0.0
    %1397 = vmatprep.subr.mxu0 0.0
    %1398 = vmatpush1.msra.mxu0 0.0
    %1399 = vmatprep.subr.mxu0 0.0
    %1400 = vmatpush1.msra.mxu0 0.0
    %1401 = vmatprep.subr.mxu0 0.0
    %1402 = vmatpush1.msra.mxu0 0.0
    %1403 = vmatprep.subr.mxu0 0.0
    %1404 = vmatpush1.msra.mxu0 0.0
    %1405 = vmatprep.subr.mxu0 0.0
    %1406 = vmatpush1.msra.mxu0 0.0
    %1407 = vmatprep.subr.mxu0 0.0
    %1408 = vmatpush1.msra.mxu0 0.0
    %1409 = vmatprep.subr.mxu0 0.0
    %1410 = vmatpush1.msra.mxu0 0.0
    %1411 = vmatprep.subr.mxu0 0.0
    %1412 = vmatpush1.msra.mxu0 0.0
    %1413 = vmatprep.subr.mxu0 0.0
    %1414 = vmatpush1.msra.mxu0 0.0
    %1415 = vmatprep.subr.mxu0 0.0
    %1416 = vmatpush1.msra.mxu0 0.0
    %1417 = vmatprep.subr.mxu0 0.0
    %1418 = vmatpush1.msra.mxu0 0.0
    %1419 = vmatprep.subr.mxu0 0.0
    %1420 = vmatpush1.msra.mxu0 %v1386
    %1421 = vmatprep.subr.mxu0 0.0
    %1422 = vmatpush1.msra.mxu0 %v1385
    %1423 = vmatprep.subr.mxu0 0.0
    %1424 = vmatpush1.msra.mxu0 %v1384
    %1425 = vmatprep.subr.mxu0 0.0
    %1426 = vmatpush1.msra.mxu0 %v1383
    %1427 = vmatprep.subr.mxu0 0.0
    %1428 = vmatpush2.msra.mxu0 0.0
    %1429 = vmatprep.subr.mxu0 0.0
    %1430 = vmatpush2.msra.mxu0 0.0
    %1431 = vmatprep.subr.mxu0 0.0
    %1432 = vmatpush2.msra.mxu0 0.0
    %1433 = vmatprep.subr.mxu0 0.0
    %1434 = vmatpush2.msra.mxu0 0.0
    %1435 = vmatprep.subr.mxu0 0.0
    %1436 = vmatpush2.msra.mxu0 0.0
    %1437 = vmatprep.subr.mxu0 0.0
    %1438 = vmatpush2.msra.mxu0 0.0
    %1439 = vmatprep.subr.mxu0 0.0
    %1440 = vmatpush2.msra.mxu0 0.0
    %1441 = vmatprep.subr.mxu0 0.0
    %1442 = vmatpush2.msra.mxu0 0.0
    %1443 = vmatprep.subr.mxu0 0.0
    %1444 = vmatpush2.msra.mxu0 0.0
    %1445 = vmatprep.subr.mxu0 0.0
    %1446 = vmatpush2.msra.mxu0 0.0
    %1447 = vmatprep.subr.mxu0 0.0
    %1448 = vmatpush2.msra.mxu0 0.0
    %1449 = vmatprep.subr.mxu0 0.0
    %1450 = vmatpush2.msra.mxu0 0.0
    %1451 = vmatprep.subr.mxu0 0.0
    %1452 = vmatpush2.msra.mxu0 0.0
    %1453 = vmatprep.subr.mxu0 0.0
    %1454 = vmatpush2.msra.mxu0 0.0
    %1455 = vmatprep.subr.mxu0 0.0
    %1456 = vmatpush2.msra.mxu0 0.0
    %1457 = vmatprep.subr.mxu0 0.0
    %1458 = vmatpush2.msra.mxu0 0.0
    %1459 = vmatprep.mubr.f32.mxu0 0.0
    %1460 = vmatmul.mubr.f32.gmra.mxu0 %v1393
    %v1461 = vpop.f32.mrf.mxu0
    %v1462 = vadd.f32 %v1391, %v1461
    %v1463 = vpop.f32.mrf.mxu0
    %1464 = vdwg.mxu0
    %v1465 = vmax.f32 %v1462, 0.0
    %v1466 = vld [vmem:[#allocation3 + $0xc0] sm:$0xff]
    %v1467 = vld [vmem:[#allocation3 + $0xc8] sm:$0xff]
    %v1468 = vld [vmem:[#allocation3 + $0xd0] sm:$0xff]
    %v1469 = vld [vmem:[#allocation3 + $0xd8] sm:$0xff]
    %v1470 = vld [vmem:[#allocation3 + $0xe0] sm:$0xff]
    %v1471 = vld [vmem:[#allocation3 + $0xe8] sm:$0xff]
    %v1472 = vld [vmem:[#allocation3 + $0xf0] sm:$0xff]
    %v1473 = vld [vmem:[#allocation3 + $0xf8] sm:$0xff]
    %v1474 = vld [vmem:[#allocation6 + $0xd] sm:$0x1]
    %v1475 = vlaneseq
    %v1476 = vshrl.u32 %v1475, 7
    %v1477 = vsub.s32 0, %v1476
    %v1478 = vrot.slane %v1474, %v1477
    %v1480 = vsel %vm750, %v1465, 0
    %1482 = vmatprep.subr.mxu0 0.0
    %1483 = vmatpush1.msra.mxu0 0.0
    %1484 = vmatprep.subr.mxu0 0.0
    %1485 = vmatpush1.msra.mxu0 0.0
    %1486 = vmatprep.subr.mxu0 0.0
    %1487 = vmatpush1.msra.mxu0 0.0
    %1488 = vmatprep.subr.mxu0 0.0
    %1489 = vmatpush1.msra.mxu0 0.0
    %1490 = vmatprep.subr.mxu0 0.0
    %1491 = vmatpush1.msra.mxu0 0.0
    %1492 = vmatprep.subr.mxu0 0.0
    %1493 = vmatpush1.msra.mxu0 0.0
    %1494 = vmatprep.subr.mxu0 0.0
    %1495 = vmatpush1.msra.mxu0 0.0
    %1496 = vmatprep.subr.mxu0 0.0
    %1497 = vmatpush1.msra.mxu0 0.0
    %1498 = vmatprep.subr.mxu0 0.0
    %1499 = vmatpush1.msra.mxu0 %v1473
    %1500 = vmatprep.subr.mxu0 0.0
    %1501 = vmatpush1.msra.mxu0 %v1472
    %1502 = vmatprep.subr.mxu0 0.0
    %1503 = vmatpush1.msra.mxu0 %v1471
    %1504 = vmatprep.subr.mxu0 0.0
    %1505 = vmatpush1.msra.mxu0 %v1470
    %1506 = vmatprep.subr.mxu0 0.0
    %1507 = vmatpush1.msra.mxu0 %v1469
    %1508 = vmatprep.subr.mxu0 0.0
    %1509 = vmatpush1.msra.mxu0 %v1468
    %1510 = vmatprep.subr.mxu0 0.0
    %1511 = vmatpush1.msra.mxu0 %v1467
    %1512 = vmatprep.subr.mxu0 0.0
    %1513 = vmatpush1.msra.mxu0 %v1466
    %1514 = vmatprep.subr.mxu0 0.0
    %1515 = vmatpush2.msra.mxu0 0.0
    %1516 = vmatprep.subr.mxu0 0.0
    %1517 = vmatpush2.msra.mxu0 0.0
    %1518 = vmatprep.subr.mxu0 0.0
    %1519 = vmatpush2.msra.mxu0 0.0
    %1520 = vmatprep.subr.mxu0 0.0
    %1521 = vmatpush2.msra.mxu0 0.0
    %1522 = vmatprep.subr.mxu0 0.0
    %1523 = vmatpush2.msra.mxu0 0.0
    %1524 = vmatprep.subr.mxu0 0.0
    %1525 = vmatpush2.msra.mxu0 0.0
    %1526 = vmatprep.subr.mxu0 0.0
    %1527 = vmatpush2.msra.mxu0 0.0
    %1528 = vmatprep.subr.mxu0 0.0
    %1529 = vmatpush2.msra.mxu0 0.0
    %1530 = vmatprep.subr.mxu0 0.0
    %1531 = vmatpush2.msra.mxu0 0.0
    %1532 = vmatprep.subr.mxu0 0.0
    %1533 = vmatpush2.msra.mxu0 0.0
    %1534 = vmatprep.subr.mxu0 0.0
    %1535 = vmatpush2.msra.mxu0 0.0
    %1536 = vmatprep.subr.mxu0 0.0
    %1537 = vmatpush2.msra.mxu0 0.0
    %1538 = vmatprep.subr.mxu0 0.0
    %1539 = vmatpush2.msra.mxu0 0.0
    %1540 = vmatprep.subr.mxu0 0.0
    %1541 = vmatpush2.msra.mxu0 0.0
    %1542 = vmatprep.subr.mxu0 0.0
    %1543 = vmatpush2.msra.mxu0 0.0
    %1544 = vmatprep.subr.mxu0 0.0
    %1545 = vmatpush2.msra.mxu0 0.0
    %1546 = vmatprep.mubr.f32.mxu0 0.0
    %1547 = vmatmul.mubr.f32.gmra.mxu0 %v1480
    %v1548 = vpop.f32.mrf.mxu0
    %v1549 = vadd.f32 %v1478, %v1548
    %v1550 = vpop.f32.mrf.mxu0
    %1551 = vdwg.mxu0
    %v1552 = vadd.f32 %v1357, %v1549
    %v1553 = vld [vmem:[#allocation6 + $0x12] sm:$0x1]
    %v1554 = vld [vmem:[#allocation6 + $0x13] sm:$0x1]
    %v1555 = vsel %vm90, %v1552, 0.0
    %1556 = vadd.xlane.f32.xlu0 %v1555
    %v1557 = vpop.xlane.xlu0 %1556
    %v1558 = vmul.f32 %v1557, %v94
    %v1559 = vsub.f32 %v1552, %v1558
    %v1560 = vmul.f32 %v1559, %v1559
    %v1561 = vsel %vm90, %v1560, 0.0
    %1562 = vadd.xlane.f32.xlu0 %v1561
    %v1563 = vpop.xlane.xlu0 %1562
    %v1564 = vmul.f32 %v1563, %v94
    %v1565 = vadd.f32 %v1564, 1e-05
    %v1566 = vrsqrt.pop %v1565
    %v1567 = vmul.f32 %v1559, %v1566
    %v1568 = vlaneseq
    %v1569 = vshrl.u32 %v1568, 7
    %v1570 = vsub.s32 0, %v1569
    %v1571 = vrot.slane %v1553, %v1570
    %v1572 = vmul.f32 %v1567, %v1571
    %v1573 = vlaneseq
    %v1574 = vshrl.u32 %v1573, 7
    %v1575 = vsub.s32 0, %v1574
    %v1576 = vrot.slane %v1554, %v1575
    %v1577 = vadd.f32 %v1572, %v1576
    %v1578 = vld [vmem:[#allocation6 + $0x14] sm:$0x1]
    %v1579 = vld [vmem:[#allocation6 + $0x15] sm:$0x1]
    %v1580 = vsel %vm90, %v1577, 0.0
    %1581 = vadd.xlane.f32.xlu0 %v1580
    %v1582 = vpop.xlane.xlu0 %1581
    %v1583 = vmul.f32 %v1582, %v94
    %v1584 = vsub.f32 %v1577, %v1583
    %v1585 = vmul.f32 %v1584, %v1584
    %v1586 = vsel %vm90, %v1585, 0.0
    %1587 = vadd.xlane.f32.xlu0 %v1586
    %v1588 = vpop.xlane.xlu0 %1587
    %v1589 = vmul.f32 %v1588, %v94
    %v1590 = vadd.f32 %v1589, 1e-05
    %v1591 = vrsqrt.pop %v1590
    %v1592 = vmul.f32 %v1584, %v1591
    %v1593 = vlaneseq
    %v1594 = vshrl.u32 %v1593, 7
    %v1595 = vsub.s32 0, %v1594
    %v1596 = vrot.slane %v1578, %v1595
    %v1597 = vmul.f32 %v1592, %v1596
    %v1598 = vlaneseq
    %v1599 = vshrl.u32 %v1598, 7
    %v1600 = vsub.s32 0, %v1599
    %v1601 = vrot.slane %v1579, %v1600
    %v1602 = vadd.f32 %v1597, %v1601
    %1603 = vst.msk [vmem:[#allocation8] sm:$0x1] %vm81, %v1602
    // Predicated region
    $region26: #{transformer_unary_agg_forward.1} parent=1 // pred_check
      _
    $region27: #{transformer_unary_agg_forward.1} parent=1 // pred_check_branch
      %1605 = sbr.rel (0) target = $region29
    $region28: #{transformer_unary_agg_forward.1} parent=1 // pred_region
      %s1607 = ssub.s32 16, 16
      %1608 = vsyncadd [#allocation5], %s1607
      %s1610 = sshll.u32 [#allocation8], 4
      %s1611 = int_to_ptr.vmem [resolvable:$true] %s1610
      %1613 = dma.vmem_to_hbm [thread:$0]  %s1611, 16, %s4, [#allocation5]
    $region29: #{transformer_unary_agg_forward.1} parent=1 // pred_fallthru
      _
    // Predicated region
    $region30: #{transformer_unary_agg_forward.1} parent=1 // pred_check
      _
    $region31: #{transformer_unary_agg_forward.1} parent=1 // pred_check_branch
      %1615 = sbr.rel (0) target = $region33
    $region32: #{transformer_unary_agg_forward.1} parent=1 // pred_region
      %1616 = dma.done [#allocation5], 16
    $region33: #{transformer_unary_agg_forward.1} parent=1 // pred_fallthru
      _
    %1617 = vsyncpa [#allocation4], 1
    %1618 = vsyncpa [#allocation7], 1
    %1619 = vsyncpa [#allocation5], 1

</llo_original>
